<compile_context>
chip_gen: v6e
topology: v6e:2x2x1
jax: 0.10.0
libtpu: 0.0.40
codegen_flags: <defaults>
</compile_context>

<pallas_src>
import functools

import jax
import jax.numpy as jnp
from jax.experimental import pallas as pl
from jax.experimental.pallas import tpu as pltpu


_DN = (((1,), (0,)), ((), ()))      # contract lhs last dim with rhs first dim
_DN_T = (((1,), (1,)), ((), ()))    # contract lhs last dim with rhs last dim


def _round_up(x, m):
    return (x + m - 1) // m * m


@functools.lru_cache(maxsize=None)
def _vmem_limit_bytes():
    """Generation-aware VMEM budget (v5e/v6e: 128 MiB physical, v7x: 64 MiB per TC)."""
    try:
        cap = int(pltpu.get_tpu_info().vmem_capacity_bytes)
    except Exception:  # conservative fallback if the query is unavailable
        cap = 64 * 1024 * 1024
    return max(32 * 1024 * 1024, min(cap * 3 // 4, 96 * 1024 * 1024))


def _cparams(dims):
    return pltpu.CompilerParams(dimension_semantics=dims,
                                vmem_limit_bytes=_vmem_limit_bytes())


# ---------------------------------------------------------------------------
# Row-tiled bf16 projection:  (N, D) x (D, F) -> (N, F) bf16, f32 MXU accumulation
# (used for the fused Q|K|V projection of the segment and the K|V projection of memory)
# ---------------------------------------------------------------------------
def _proj_kernel(x_ref, w_ref, o_ref):
    o_ref[...] = jax.lax.dot_general(
        x_ref[...], w_ref[...], _DN,
        preferred_element_type=jnp.float32).astype(o_ref.dtype)


def project(x, w, *, tm_cap=512):
    """x: (N, D) bf16, w: (D, F) bf16 -> (N, F) bf16."""
    n, d = x.shape
    f = w.shape[1]
    tm = min(tm_cap, _round_up(n, 8))
    np_ = _round_up(n, tm)
    x_p = jnp.pad(x, ((0, np_ - n), (0, 0))) if np_ != n else x
    out = pl.pallas_call(
        _proj_kernel,
        out_shape=jax.ShapeDtypeStruct((np_, f), jnp.bfloat16),
        grid=(np_ // tm,),
        in_specs=[
            pl.BlockSpec((tm, d), lambda i: (i, 0)),
            pl.BlockSpec((d, f), lambda i: (0, 0)),
        ],
        out_specs=pl.BlockSpec((tm, f), lambda i: (i, 0)),
        compiler_params=_cparams(("parallel",)),
    )(x_p, w)
    return out[:n] if np_ != n else out


# ---------------------------------------------------------------------------
# Attention core per batch row: causal softmax over [memory; segment] without ever
# concatenating K/V in HBM (memory and segment scores are computed separately and
# combined through a joint max / denominator).
# ---------------------------------------------------------------------------
def _attn_core_kernel(qkv_ref, kvm_ref, o_ref):
    qkv = qkv_ref[...]                       # (S, 3D) bf16
    kvm = kvm_ref[...]                       # (M, 2D) bf16
    d = kvm.shape[1] // 2
    q, kh, vh = qkv[:, :d], qkv[:, d:2 * d], qkv[:, 2 * d:]
    km, vm = kvm[:, :d], kvm[:, d:]

    s_len = q.shape[0]
    scale = 1.0 / jnp.sqrt(jnp.float32(d))

    # memory keys visible to every query position; segment part is causal
    sm = jax.lax.dot_general(q, km, _DN_T, preferred_element_type=jnp.float32) * scale
    sh = jax.lax.dot_general(q, kh, _DN_T, preferred_element_type=jnp.float32) * scale
    q_pos = jax.lax.broadcasted_iota(jnp.int32, (s_len, s_len), 0)
    k_pos = jax.lax.broadcasted_iota(jnp.int32, (s_len, s_len), 1)
    sh = jnp.where(k_pos <= q_pos, sh, jnp.float32(-1e30))

    m = jnp.maximum(sm.max(axis=-1, keepdims=True), sh.max(axis=-1, keepdims=True))
    pm = jnp.exp(sm - m)
    ph = jnp.exp(sh - m)
    denom = pm.sum(axis=-1, keepdims=True) + ph.sum(axis=-1, keepdims=True)

    ctx = (jax.lax.dot_general(pm.astype(jnp.bfloat16), vm, _DN,
                               preferred_element_type=jnp.float32)
           + jax.lax.dot_general(ph.astype(jnp.bfloat16), vh, _DN,
                                 preferred_element_type=jnp.float32))
    ctx = ctx * pl.reciprocal(denom, approx=True)
    o_ref[...] = ctx.astype(o_ref.dtype)


def attention_core(qkv_h, kv_mem):
    """qkv_h: (B, S, 3D) bf16, kv_mem: (B, M, 2D) bf16 -> context (B, S, D) bf16."""
    bsz, s_len, d3 = qkv_h.shape
    d = d3 // 3
    m_len = kv_mem.shape[1]
    return pl.pallas_call(
        _attn_core_kernel,
        out_shape=jax.ShapeDtypeStruct((bsz, s_len, d), jnp.bfloat16),
        grid=(bsz,),
        in_specs=[
            pl.BlockSpec((None, s_len, d3), lambda b: (b, 0, 0)),
            pl.BlockSpec((None, m_len, 2 * d), lambda b: (b, 0, 0)),
        ],
        out_specs=pl.BlockSpec((None, s_len, d), lambda b: (b, 0, 0)),
        compiler_params=_cparams(("parallel",)),
    )(qkv_h, kv_mem)


# ---------------------------------------------------------------------------
# Output projection + residual + layernorm, row-tiled over all (B*S) rows.
# ---------------------------------------------------------------------------
def _oproj_ln_kernel(ctx_ref, h_ref, wo_ref, g_ref, b_ref, o_ref, *, eps=1e-5):
    out = jax.lax.dot_general(ctx_ref[...], wo_ref[...], _DN,
                              preferred_element_type=jnp.float32)
    x = h_ref[...].astype(jnp.float32) + out
    mu = jnp.mean(x, axis=-1, keepdims=True)
    var = jnp.mean((x - mu) ** 2, axis=-1, keepdims=True)
    o_ref[...] = ((x - mu) * jax.lax.rsqrt(var + eps) * g_ref[...]
                  + b_ref[...]).astype(o_ref.dtype)


def oproj_residual_ln(ctx, h, wo, gamma, beta, *, tm_cap=512):
    """ctx, h: (N, D) bf16; wo: (D, D) bf16 -> LN(h + ctx @ wo) as (N, D) bf16."""
    n, d = ctx.shape
    tm = min(tm_cap, _round_up(n, 8))
    np_ = _round_up(n, tm)
    if np_ != n:
        ctx = jnp.pad(ctx, ((0, np_ - n), (0, 0)))
        h = jnp.pad(h, ((0, np_ - n), (0, 0)))
    out = pl.pallas_call(
        _oproj_ln_kernel,
        out_shape=jax.ShapeDtypeStruct((np_, d), jnp.bfloat16),
        grid=(np_ // tm,),
        in_specs=[
            pl.BlockSpec((tm, d), lambda i: (i, 0)),
            pl.BlockSpec((tm, d), lambda i: (i, 0)),
            pl.BlockSpec((d, d), lambda i: (0, 0)),
            pl.BlockSpec((1, d), lambda i: (0, 0)),
            pl.BlockSpec((1, d), lambda i: (0, 0)),
        ],
        out_specs=pl.BlockSpec((tm, d), lambda i: (i, 0)),
        compiler_params=_cparams(("parallel",)),
    )(ctx, h, wo, gamma, beta)
    return out[:n] if np_ != n else out


# ---------------------------------------------------------------------------
# Fused FFN sublayer kernel:  LN(x + relu(x W1) W2), d_ff tiled as reduction axis
# ---------------------------------------------------------------------------
def _ffn_block_kernel(x_ref, w1_ref, w2_ref, g_ref, b_ref, o_ref, acc_ref, *, eps=1e-5):
    j = pl.program_id(1)

    @pl.when(j == 0)
    def _():
        acc_ref[...] = jnp.zeros_like(acc_ref)

    hid = jax.lax.dot_general(x_ref[...], w1_ref[...], _DN,
                              preferred_element_type=jnp.float32)      # (tm, tf) f32
    hid = jnp.maximum(hid, 0.0)
    acc_ref[...] += jax.lax.dot_general(hid.astype(jnp.bfloat16), w2_ref[...], _DN,
                                        preferred_element_type=jnp.float32)

    @pl.when(j == pl.num_programs(1) - 1)
    def _():
        y = x_ref[...].astype(jnp.float32) + acc_ref[...]
        mu = jnp.mean(y, axis=-1, keepdims=True)
        var = jnp.mean((y - mu) ** 2, axis=-1, keepdims=True)
        o_ref[...] = ((y - mu) * jax.lax.rsqrt(var + eps) * g_ref[...]
                      + b_ref[...]).astype(o_ref.dtype)


def ffn_block(x, w1, w2, gamma, beta, *, tm_cap=512, tf_cap=1024):
    """x: (N, D) bf16, w1: (D, F) bf16, w2: (F, D) bf16 -> (N, D) bf16."""
    n, d = x.shape
    f = w1.shape[1]
    tm = min(tm_cap, _round_up(n, 8))
    np_ = _round_up(n, tm)
    tf = min(tf_cap, _round_up(f, 128))
    fp = _round_up(f, tf)

    x_p = jnp.pad(x, ((0, np_ - n), (0, 0))) if np_ != n else x
    w1_p = jnp.pad(w1, ((0, 0), (0, fp - f))) if fp != f else w1
    w2_p = jnp.pad(w2, ((0, fp - f), (0, 0))) if fp != f else w2

    out = pl.pallas_call(
        _ffn_block_kernel,
        out_shape=jax.ShapeDtypeStruct((np_, d), jnp.bfloat16),
        grid=(np_ // tm, fp // tf),
        in_specs=[
            pl.BlockSpec((tm, d), lambda i, j: (i, 0)),
            pl.BlockSpec((d, tf), lambda i, j: (0, j)),
            pl.BlockSpec((tf, d), lambda i, j: (j, 0)),
            pl.BlockSpec((1, d), lambda i, j: (0, 0)),
            pl.BlockSpec((1, d), lambda i, j: (0, 0)),
        ],
        out_specs=pl.BlockSpec((tm, d), lambda i, j: (i, 0)),
        scratch_shapes=[pltpu.VMEM((tm, d), jnp.float32)],
        compiler_params=_cparams(("parallel", "arbitrary")),
    )(x_p, w1_p, w2_p, gamma, beta)
    return out[:n] if np_ != n else out


# ---------------------------------------------------------------------------
# Flash-softmax NLL over a tiled vocabulary (tied embedding as softmax weights)
# ---------------------------------------------------------------------------
def _nll_kernel(y_ref, h_ref, e_ref, o_ref, m_ref, l_ref, t_ref, *, vocab, tv):
    j = pl.program_id(1)

    @pl.when(j == 0)
    def _():
        m_ref[...] = jnp.full_like(m_ref, -1e30)
        l_ref[...] = jnp.zeros_like(l_ref)
        t_ref[...] = jnp.zeros_like(t_ref)

    # bf16 activations x bf16 tied embedding, contract feature dims (no explicit e.T)
    logits = jax.lax.dot_general(h_ref[...], e_ref[...], _DN_T,
                                 preferred_element_type=jnp.float32)   # (tm, tv)
    col = jax.lax.broadcasted_iota(jnp.int32, logits.shape, 1) + j * tv
    logits = jnp.where(col < vocab, logits, jnp.float32(-1e30))

    y = y_ref[...]                              # (tm, 1) int32
    t_ref[...] += jnp.sum(jnp.where(col == y, logits, 0.0), axis=-1, keepdims=True)

    m_prev = m_ref[...]
    m_new = jnp.maximum(m_prev, logits.max(axis=-1, keepdims=True))
    alpha = jnp.exp(m_prev - m_new)
    l_ref[...] = alpha * l_ref[...] + jnp.sum(jnp.exp(logits - m_new),
                                              axis=-1, keepdims=True)
    m_ref[...] = m_new

    @pl.when(j == pl.num_programs(1) - 1)
    def _():
        o_ref[...] = (m_ref[...] + jnp.log(l_ref[...])) - t_ref[...]


def adaptive_nll(h, embed_bf16, y, *, tm_cap=512, tv_cap=1024):
    """h: (N, D) bf16, embed: (V, D) bf16, y: (N,) int -> (N,) f32 NLL."""
    n, d = h.shape
    v = embed_bf16.shape[0]
    tm = min(tm_cap, _round_up(n, 8))
    np_ = _round_up(n, tm)
    tv = min(tv_cap, _round_up(v, 8))
    vp = _round_up(v, tv)

    h_p = jnp.pad(h, ((0, np_ - n), (0, 0))) if np_ != n else h
    y_p = jnp.pad(y, (0, np_ - n)) if np_ != n else y
    e_p = jnp.pad(embed_bf16, ((0, vp - v), (0, 0))) if vp != v else embed_bf16
    y2 = y_p.reshape(np_, 1).astype(jnp.int32)

    kernel = functools.partial(_nll_kernel, vocab=v, tv=tv)
    out = pl.pallas_call(
        kernel,
        out_shape=jax.ShapeDtypeStruct((np_, 1), jnp.float32),
        grid=(np_ // tm, vp // tv),
        in_specs=[
            pl.BlockSpec((tm, 1), lambda i, j: (i, 0)),
            pl.BlockSpec((tm, d), lambda i, j: (i, 0)),
            pl.BlockSpec((tv, d), lambda i, j: (j, 0)),
        ],
        out_specs=pl.BlockSpec((tm, 1), lambda i, j: (i, 0)),
        scratch_shapes=[pltpu.VMEM((tm, 1), jnp.float32)] * 3,
        compiler_params=_cparams(("parallel", "arbitrary")),
    )(y2, h_p, e_p)
    return out[:n, 0]


# ---------------------------------------------------------------------------
# Params + forward
# ---------------------------------------------------------------------------
def init_params(key, vocab, d_model, d_ff):
    ks = jax.random.split(key, 5)
    scale = 0.02
    bf = jnp.bfloat16
    return {
        # tied between encoder.head and decoder.head (see Blur._tie_weights)
        "embed": (jax.random.normal(ks[0], (vocab, d_model), jnp.float32) * scale).astype(bf),
        # fused Wq | Wk | Wv  (columns [0:D]=Q, [D:2D]=K, [2D:3D]=V)
        "Wqkv": (jax.random.normal(ks[1], (d_model, 3 * d_model), jnp.float32) * scale).astype(bf),
        "Wo": (jax.random.normal(ks[2], (d_model, d_model), jnp.float32) * scale).astype(bf),
        "W1": (jax.random.normal(ks[3], (d_model, d_ff), jnp.float32) * scale).astype(bf),
        "W2": (jax.random.normal(ks[4], (d_ff, d_model), jnp.float32) * scale).astype(bf),
        "ln1_g": jnp.ones((d_model,), jnp.float32),
        "ln1_b": jnp.zeros((d_model,), jnp.float32),
        "ln2_g": jnp.ones((d_model,), jnp.float32),
        "ln2_b": jnp.zeros((d_model,), jnp.float32),
    }


def blur_forward(params, x_tok, y_tok, memory):
    """x_tok, y_tok: (S, B) int32; memory: (M, B, D) f32.
    Returns (loss, new_memory): loss (B, S), new_memory (M, B, D)."""
    s_len, batch = x_tok.shape
    m_len = memory.shape[0]
    embed = params["embed"]                       # (V, D) bf16, tied enc/dec head
    d = embed.shape[1]

    # ---- encoder (adaptive embedding, single cluster); bf16 batch-major stream ----
    # TODO(synk): embedding gather stays in XLA; nn.Dropout(0.1) is identity in eval mode.
    h = jnp.take(embed, x_tok.T, axis=0)          # (B, S, D) bf16
    h_flat = h.reshape(batch * s_len, d)

    mem_bm = jnp.transpose(memory, (1, 0, 2)).astype(jnp.bfloat16)     # (B, M, D) bf16
    mem_flat = mem_bm.reshape(batch * m_len, d)

    # ---- transformer layer with XL memory (no HBM [mem; h] concatenation) ----
    wqkv = params["Wqkv"]
    qkv_h = project(h_flat, wqkv).reshape(batch, s_len, 3 * d)          # (B, S, 3D)
    kv_m = project(mem_flat, wqkv[:, d:]).reshape(batch, m_len, 2 * d)  # (B, M, 2D)

    ctx = attention_core(qkv_h, kv_m)                                   # (B, S, D) bf16
    h1_flat = oproj_residual_ln(
        ctx.reshape(batch * s_len, d), h_flat, params["Wo"],
        params["ln1_g"].reshape(1, d), params["ln1_b"].reshape(1, d))   # (B*S, D) bf16
    h2_flat = ffn_block(
        h1_flat, params["W1"], params["W2"],
        params["ln2_g"].reshape(1, d), params["ln2_b"].reshape(1, d))   # (B*S, D) bf16
    h2 = h2_flat.reshape(batch, s_len, d)

    new_memory = jax.lax.stop_gradient(
        jnp.concatenate(
            [memory, jnp.transpose(h2, (1, 0, 2)).astype(memory.dtype)],
            axis=0)[-m_len:])                                           # (M, B, D)

    # ---- decoder (adaptive log-softmax w/ loss; tied weights; single cluster) ----
    nll = adaptive_nll(h2_flat, embed, y_tok.T.reshape(-1))             # (B*S,) (b, s) order
    # Reproduce the literal PyTorch `-output.output.view(y.size(1), -1)` over the
    # x.view(-1, D) flattening order of a seq-major (S, B, D) tensor (s*B + b order).
    nll_sb = nll.reshape(batch, s_len).T                                # (S, B)
    loss = nll_sb.reshape(y_tok.shape[1], -1)                           # (B, S)
    return loss, new_memory


if __name__ == "__main__":
    VOCAB, D_MODEL, D_FF = 512, 128, 256
    SEQ, BATCH, MEM = 8, 2, 8

    key = jax.random.PRNGKey(0)
    k_param, k_x, k_y = jax.random.split(key, 3)

    params = init_params(k_param, VOCAB, D_MODEL, D_FF)
    x_tok = jax.random.randint(k_x, (SEQ, BATCH), 0, VOCAB, dtype=jnp.int32)
    y_tok = jax.random.randint(k_y, (SEQ, BATCH), 0, VOCAB, dtype=jnp.int32)
    memory = jnp.zeros((MEM, BATCH, D_MODEL), jnp.float32)

    fwd = jax.jit(blur_forward)
    loss, new_memory = fwd(params, x_tok, y_tok, memory)
    jax.block_until_ready((loss, new_memory))

    assert loss.shape == (BATCH, SEQ)
    assert new_memory.shape == (MEM, BATCH, D_MODEL)
    assert bool(jnp.all(jnp.isfinite(loss)))
    print("KERNEL_OK")
</pallas_src>

<mosaic_0001>
module attributes {stable_mosaic.version = 11 : i64} {
  func.func @_oproj_ln_kernel(%arg0: i32, %arg1: memref<16x128xbf16, #tpu.memory_space<vmem>>, %arg2: memref<16x128xbf16, #tpu.memory_space<vmem>>, %arg3: memref<128x128xbf16, #tpu.memory_space<vmem>>, %arg4: memref<1x128xf32, #tpu.memory_space<vmem>>, %arg5: memref<1x128xf32, #tpu.memory_space<vmem>>, %arg6: memref<16x128xbf16, #tpu.memory_space<vmem>>) attributes {dimension_semantics = [#tpu.dimension_semantics<parallel>], iteration_bounds = array<i64: 1>, scalar_prefetch = 0 : i64, scratch_operands = 0 : i64, tpu.core_type = #tpu.core_type<tc>, window_params = [{transform_indices = @transform_0, window_bounds = array<i64: 16, 128>}, {transform_indices = @transform_1, window_bounds = array<i64: 16, 128>}, {pipeline_mode = #tpu.pipeline_mode<synchronous>, transform_indices = @transform_2, window_bounds = array<i64: 128, 128>}, {pipeline_mode = #tpu.pipeline_mode<synchronous>, transform_indices = @transform_3, window_bounds = array<i64: 1, 128>}, {pipeline_mode = #tpu.pipeline_mode<synchronous>, transform_indices = @transform_4, window_bounds = array<i64: 1, 128>}, {transform_indices = @transform_5, window_bounds = array<i64: 16, 128>}]} {
    %c0 = arith.constant 0 : index
    %c0_0 = arith.constant 0 : index
    %0 = vector.load %arg1[%c0, %c0_0] : memref<16x128xbf16, #tpu.memory_space<vmem>>, vector<16x128xbf16>
    %c0_1 = arith.constant 0 : index
    %c0_2 = arith.constant 0 : index
    %1 = vector.load %arg3[%c0_1, %c0_2] : memref<128x128xbf16, #tpu.memory_space<vmem>>, vector<128x128xbf16>
    %cst = arith.constant dense<0.000000e+00> : vector<16x128xf32>
    %2 = tpu.matmul %0, %1, %cst {dimension_numbers = #tpu.dot_dimension_numbers<[1], [0], [0], [1], [0, 0, 1, 1], [], []>} : vector<16x128xbf16>, vector<128x128xbf16>, vector<16x128xf32> -> vector<16x128xf32>
    %c0_3 = arith.constant 0 : index
    %c0_4 = arith.constant 0 : index
    %3 = vector.load %arg2[%c0_3, %c0_4] : memref<16x128xbf16, #tpu.memory_space<vmem>>, vector<16x128xbf16>
    %4 = arith.extf %3 : vector<16x128xbf16> to vector<16x128xf32>
    %5 = arith.addf %4, %2 : vector<16x128xf32>
    %cst_5 = arith.constant dense<0.000000e+00> : vector<16xf32>
    %6 = vector.multi_reduction <add>, %5, %cst_5 [1] : vector<16x128xf32> to vector<16xf32>
    %7 = vector.shape_cast %6 : vector<16xf32> to vector<16x1xf32>
    %cst_6 = arith.constant 1.280000e+02 : f32
    %8 = vector.broadcast %cst_6 : f32 to vector<16x1xf32>
    %9 = arith.divf %7, %8 : vector<16x1xf32>
    %10 = vector.broadcast %9 : vector<16x1xf32> to vector<16x128xf32>
    %11 = arith.subf %5, %10 : vector<16x128xf32>
    %12 = arith.mulf %11, %11 : vector<16x128xf32>
    %cst_7 = arith.constant dense<0.000000e+00> : vector<16xf32>
    %13 = vector.multi_reduction <add>, %12, %cst_7 [1] : vector<16x128xf32> to vector<16xf32>
    %14 = vector.shape_cast %13 : vector<16xf32> to vector<16x1xf32>
    %cst_8 = arith.constant 1.280000e+02 : f32
    %15 = vector.broadcast %cst_8 : f32 to vector<16x1xf32>
    %16 = arith.divf %14, %15 : vector<16x1xf32>
    %17 = vector.broadcast %9 : vector<16x1xf32> to vector<16x128xf32>
    %18 = arith.subf %5, %17 : vector<16x128xf32>
    %cst_9 = arith.constant 9.99999974E-6 : f32
    %19 = vector.broadcast %cst_9 : f32 to vector<16x1xf32>
    %20 = arith.addf %16, %19 : vector<16x1xf32>
    %21 = math.rsqrt %20 : vector<16x1xf32>
    %22 = vector.broadcast %21 : vector<16x1xf32> to vector<16x128xf32>
    %23 = arith.mulf %18, %22 : vector<16x128xf32>
    %c0_10 = arith.constant 0 : index
    %c0_11 = arith.constant 0 : index
    %24 = vector.load %arg4[%c0_10, %c0_11] : memref<1x128xf32, #tpu.memory_space<vmem>>, vector<1x128xf32>
    %25 = vector.broadcast %24 : vector<1x128xf32> to vector<16x128xf32>
    %26 = arith.mulf %23, %25 : vector<16x128xf32>
    %c0_12 = arith.constant 0 : index
    %c0_13 = arith.constant 0 : index
    %27 = vector.load %arg5[%c0_12, %c0_13] : memref<1x128xf32, #tpu.memory_space<vmem>>, vector<1x128xf32>
    %28 = vector.broadcast %27 : vector<1x128xf32> to vector<16x128xf32>
    %29 = arith.addf %26, %28 : vector<16x128xf32>
    %30 = arith.truncf %29 : vector<16x128xf32> to vector<16x128xbf16>
    %c0_14 = arith.constant 0 : index
    %c0_15 = arith.constant 0 : index
    %31 = vector.load %arg6[%c0_14, %c0_15] : memref<16x128xbf16, #tpu.memory_space<vmem>>, vector<16x128xbf16>
    tpu.vector_store %arg6[%c0_14, %c0_15], %30 {strides = array<i32>} : memref<16x128xbf16, #tpu.memory_space<vmem>>, vector<16x128xbf16>,
    return
  }
  func.func @transform_0(%arg0: i32) -> (i32, i32) {
    %c0_i32 = arith.constant 0 : i32
    %c0_i32_0 = arith.constant 0 : i32
    return %arg0, %c0_i32 : i32, i32
  }
  func.func @transform_1(%arg0: i32) -> (i32, i32) {
    %c0_i32 = arith.constant 0 : i32
    %c0_i32_0 = arith.constant 0 : i32
    return %arg0, %c0_i32 : i32, i32
  }
  func.func @transform_2(%arg0: i32) -> (i32, i32) {
    %c0_i32 = arith.constant 0 : i32
    %c0_i32_0 = arith.constant 0 : i32
    %c0_i32_1 = arith.constant 0 : i32
    return %c0_i32, %c0_i32_0 : i32, i32
  }
  func.func @transform_3(%arg0: i32) -> (i32, i32) {
    %c0_i32 = arith.constant 0 : i32
    %c0_i32_0 = arith.constant 0 : i32
    %c0_i32_1 = arith.constant 0 : i32
    return %c0_i32, %c0_i32_0 : i32, i32
  }
  func.func @transform_4(%arg0: i32) -> (i32, i32) {
    %c0_i32 = arith.constant 0 : i32
    %c0_i32_0 = arith.constant 0 : i32
    %c0_i32_1 = arith.constant 0 : i32
    return %c0_i32, %c0_i32_0 : i32, i32
  }
  func.func @transform_5(%arg0: i32) -> (i32, i32) {
    %c0_i32 = arith.constant 0 : i32
    %c0_i32_0 = arith.constant 0 : i32
    return %arg0, %c0_i32 : i32, i32
  }
}

module attributes {stable_mosaic.version = 11 : i64} {
  func.func @_proj_kernel(%arg0: i32, %arg1: memref<16x128xbf16, #tpu.memory_space<vmem>>, %arg2: memref<128x384xbf16, #tpu.memory_space<vmem>>, %arg3: memref<16x384xbf16, #tpu.memory_space<vmem>>) attributes {dimension_semantics = [#tpu.dimension_semantics<parallel>], iteration_bounds = array<i64: 1>, scalar_prefetch = 0 : i64, scratch_operands = 0 : i64, tpu.core_type = #tpu.core_type<tc>, window_params = [{transform_indices = @transform_0, window_bounds = array<i64: 16, 128>}, {pipeline_mode = #tpu.pipeline_mode<synchronous>, transform_indices = @transform_1, window_bounds = array<i64: 128, 384>}, {transform_indices = @transform_2, window_bounds = array<i64: 16, 384>}]} {
    %c0 = arith.constant 0 : index
    %c0_0 = arith.constant 0 : index
    %0 = vector.load %arg1[%c0, %c0_0] : memref<16x128xbf16, #tpu.memory_space<vmem>>, vector<16x128xbf16>
    %c0_1 = arith.constant 0 : index
    %c0_2 = arith.constant 0 : index
    %1 = vector.load %arg2[%c0_1, %c0_2] : memref<128x384xbf16, #tpu.memory_space<vmem>>, vector<128x384xbf16>
    %cst = arith.constant dense<0.000000e+00> : vector<16x384xf32>
    %2 = tpu.matmul %0, %1, %cst {dimension_numbers = #tpu.dot_dimension_numbers<[1], [0], [0], [1], [0, 0, 1, 1], [], []>} : vector<16x128xbf16>, vector<128x384xbf16>, vector<16x384xf32> -> vector<16x384xf32>
    %3 = arith.truncf %2 : vector<16x384xf32> to vector<16x384xbf16>
    %c0_3 = arith.constant 0 : index
    %c0_4 = arith.constant 0 : index
    %4 = vector.load %arg3[%c0_3, %c0_4] : memref<16x384xbf16, #tpu.memory_space<vmem>>, vector<16x384xbf16>
    tpu.vector_store %arg3[%c0_3, %c0_4], %3 {strides = array<i32>} : memref<16x384xbf16, #tpu.memory_space<vmem>>, vector<16x384xbf16>,
    return
  }
  func.func @transform_0(%arg0: i32) -> (i32, i32) {
    %c0_i32 = arith.constant 0 : i32
    %c0_i32_0 = arith.constant 0 : i32
    return %arg0, %c0_i32 : i32, i32
  }
  func.func @transform_1(%arg0: i32) -> (i32, i32) {
    %c0_i32 = arith.constant 0 : i32
    %c0_i32_0 = arith.constant 0 : i32
    %c0_i32_1 = arith.constant 0 : i32
    return %c0_i32, %c0_i32_0 : i32, i32
  }
  func.func @transform_2(%arg0: i32) -> (i32, i32) {
    %c0_i32 = arith.constant 0 : i32
    %c0_i32_0 = arith.constant 0 : i32
    return %arg0, %c0_i32 : i32, i32
  }
}

module attributes {stable_mosaic.version = 11 : i64} {
  func.func @_proj_kernel(%arg0: i32, %arg1: memref<16x128xbf16, #tpu.memory_space<vmem>>, %arg2: memref<128x256xbf16, #tpu.memory_space<vmem>>, %arg3: memref<16x256xbf16, #tpu.memory_space<vmem>>) attributes {dimension_semantics = [#tpu.dimension_semantics<parallel>], iteration_bounds = array<i64: 1>, scalar_prefetch = 0 : i64, scratch_operands = 0 : i64, tpu.core_type = #tpu.core_type<tc>, window_params = [{transform_indices = @transform_0, window_bounds = array<i64: 16, 128>}, {pipeline_mode = #tpu.pipeline_mode<synchronous>, transform_indices = @transform_1, window_bounds = array<i64: 128, 256>}, {transform_indices = @transform_2, window_bounds = array<i64: 16, 256>}]} {
    %c0 = arith.constant 0 : index
    %c0_0 = arith.constant 0 : index
    %0 = vector.load %arg1[%c0, %c0_0] : memref<16x128xbf16, #tpu.memory_space<vmem>>, vector<16x128xbf16>
    %c0_1 = arith.constant 0 : index
    %c0_2 = arith.constant 0 : index
    %1 = vector.load %arg2[%c0_1, %c0_2] : memref<128x256xbf16, #tpu.memory_space<vmem>>, vector<128x256xbf16>
    %cst = arith.constant dense<0.000000e+00> : vector<16x256xf32>
    %2 = tpu.matmul %0, %1, %cst {dimension_numbers = #tpu.dot_dimension_numbers<[1], [0], [0], [1], [0, 0, 1, 1], [], []>} : vector<16x128xbf16>, vector<128x256xbf16>, vector<16x256xf32> -> vector<16x256xf32>
    %3 = arith.truncf %2 : vector<16x256xf32> to vector<16x256xbf16>
    %c0_3 = arith.constant 0 : index
    %c0_4 = arith.constant 0 : index
    %4 = vector.load %arg3[%c0_3, %c0_4] : memref<16x256xbf16, #tpu.memory_space<vmem>>, vector<16x256xbf16>
    tpu.vector_store %arg3[%c0_3, %c0_4], %3 {strides = array<i32>} : memref<16x256xbf16, #tpu.memory_space<vmem>>, vector<16x256xbf16>,
    return
  }
  func.func @transform_0(%arg0: i32) -> (i32, i32) {
    %c0_i32 = arith.constant 0 : i32
    %c0_i32_0 = arith.constant 0 : i32
    return %arg0, %c0_i32 : i32, i32
  }
  func.func @transform_1(%arg0: i32) -> (i32, i32) {
    %c0_i32 = arith.constant 0 : i32
    %c0_i32_0 = arith.constant 0 : i32
    %c0_i32_1 = arith.constant 0 : i32
    return %c0_i32, %c0_i32_0 : i32, i32
  }
  func.func @transform_2(%arg0: i32) -> (i32, i32) {
    %c0_i32 = arith.constant 0 : i32
    %c0_i32_0 = arith.constant 0 : i32
    return %arg0, %c0_i32 : i32, i32
  }
}

module attributes {stable_mosaic.version = 11 : i64} {
  func.func @_attn_core_kernel(%arg0: i32, %arg1: memref<1x8x384xbf16, #tpu.memory_space<vmem>>, %arg2: memref<1x8x256xbf16, #tpu.memory_space<vmem>>, %arg3: memref<1x8x128xbf16, #tpu.memory_space<vmem>>) attributes {dimension_semantics = [#tpu.dimension_semantics<parallel>], iteration_bounds = array<i64: 2>, scalar_prefetch = 0 : i64, scratch_operands = 0 : i64, tpu.core_type = #tpu.core_type<tc>, window_params = [{transform_indices = @transform_0, window_bounds = array<i64: 1, 8, 384>}, {transform_indices = @transform_1, window_bounds = array<i64: 1, 8, 256>}, {transform_indices = @transform_2, window_bounds = array<i64: 1, 8, 128>}]} {
    %c0 = arith.constant 0 : index
    %c0_0 = arith.constant 0 : index
    %c0_1 = arith.constant 0 : index
    %0 = vector.load %arg1[%c0, %c0_0, %c0_1] : memref<1x8x384xbf16, #tpu.memory_space<vmem>>, vector<1x8x384xbf16>
    %1 = vector.shape_cast %0 : vector<1x8x384xbf16> to vector<8x384xbf16>
    %c0_2 = arith.constant 0 : index
    %c0_3 = arith.constant 0 : index
    %c0_4 = arith.constant 0 : index
    %2 = vector.load %arg2[%c0_2, %c0_3, %c0_4] : memref<1x8x256xbf16, #tpu.memory_space<vmem>>, vector<1x8x256xbf16>
    %3 = vector.shape_cast %2 : vector<1x8x256xbf16> to vector<8x256xbf16>
    %4 = vector.extract_strided_slice %1 {offsets = [0, 0], sizes = [8, 128], strides = [1, 1]} : vector<8x384xbf16> to vector<8x128xbf16>
    %5 = vector.extract_strided_slice %1 {offsets = [0, 128], sizes = [8, 128], strides = [1, 1]} : vector<8x384xbf16> to vector<8x128xbf16>
    %6 = vector.extract_strided_slice %1 {offsets = [0, 256], sizes = [8, 128], strides = [1, 1]} : vector<8x384xbf16> to vector<8x128xbf16>
    %7 = vector.extract_strided_slice %3 {offsets = [0, 0], sizes = [8, 128], strides = [1, 1]} : vector<8x256xbf16> to vector<8x128xbf16>
    %8 = vector.extract_strided_slice %3 {offsets = [0, 128], sizes = [8, 128], strides = [1, 1]} : vector<8x256xbf16> to vector<8x128xbf16>
    %cst = arith.constant 1.280000e+02 : f32
    %9 = math.sqrt %cst : f32
    %cst_5 = arith.constant 1.000000e+00 : f32
    %10 = arith.divf %cst_5, %9 : f32
    %cst_6 = arith.constant dense<0.000000e+00> : vector<8x8xf32>
    %11 = tpu.matmul %4, %7, %cst_6 {dimension_numbers = #tpu.dot_dimension_numbers<[1], [1], [0], [0], [0, 0, 1, 0], [], []>} : vector<8x128xbf16>, vector<8x128xbf16>, vector<8x8xf32> -> vector<8x8xf32>
    %12 = vector.broadcast %10 : f32 to vector<8x8xf32>
    %13 = arith.mulf %11, %12 : vector<8x8xf32>
    %cst_7 = arith.constant dense<0.000000e+00> : vector<8x8xf32>
    %14 = tpu.matmul %4, %5, %cst_7 {dimension_numbers = #tpu.dot_dimension_numbers<[1], [1], [0], [0], [0, 0, 1, 0], [], []>} : vector<8x128xbf16>, vector<8x128xbf16>, vector<8x8xf32> -> vector<8x8xf32>
    %15 = vector.broadcast %10 : f32 to vector<8x8xf32>
    %16 = arith.mulf %14, %15 : vector<8x8xf32>
    %17 = tpu.iota {dimensions = array<i32: 0>} : vector<8x8xi32>
    %18 = tpu.iota {dimensions = array<i32: 1>} : vector<8x8xi32>
    %19 = arith.cmpi sle, %18, %17 : vector<8x8xi32>
    %cst_8 = arith.constant -1.000000e+30 : f32
    %20 = vector.broadcast %cst_8 : f32 to vector<8x8xf32>
    %21 = arith.select %19, %16, %20 : vector<8x8xi1>, vector<8x8xf32>
    %cst_9 = arith.constant dense<0xFF800000> : vector<8xf32>
    %22 = vector.multi_reduction <maximumf>, %13, %cst_9 [1] : vector<8x8xf32> to vector<8xf32>
    %23 = vector.shape_cast %22 : vector<8xf32> to vector<8x1xf32>
    %cst_10 = arith.constant dense<0xFF800000> : vector<8xf32>
    %24 = vector.multi_reduction <maximumf>, %21, %cst_10 [1] : vector<8x8xf32> to vector<8xf32>
    %25 = vector.shape_cast %24 : vector<8xf32> to vector<8x1xf32>
    %26 = arith.maximumf %23, %25 : vector<8x1xf32>
    %27 = vector.broadcast %26 : vector<8x1xf32> to vector<8x8xf32>
    %28 = arith.subf %13, %27 : vector<8x8xf32>
    %29 = math.exp %28 : vector<8x8xf32>
    %30 = vector.broadcast %26 : vector<8x1xf32> to vector<8x8xf32>
    %31 = arith.subf %21, %30 : vector<8x8xf32>
    %32 = math.exp %31 : vector<8x8xf32>
    %cst_11 = arith.constant dense<0.000000e+00> : vector<8xf32>
    %33 = vector.multi_reduction <add>, %29, %cst_11 [1] : vector<8x8xf32> to vector<8xf32>
    %34 = vector.shape_cast %33 : vector<8xf32> to vector<8x1xf32>
    %cst_12 = arith.constant dense<0.000000e+00> : vector<8xf32>
    %35 = vector.multi_reduction <add>, %32, %cst_12 [1] : vector<8x8xf32> to vector<8xf32>
    %36 = vector.shape_cast %35 : vector<8xf32> to vector<8x1xf32>
    %37 = arith.addf %34, %36 : vector<8x1xf32>
    %38 = arith.truncf %29 : vector<8x8xf32> to vector<8x8xbf16>
    %cst_13 = arith.constant dense<0.000000e+00> : vector<8x128xf32>
    %39 = tpu.matmul %38, %8, %cst_13 {dimension_numbers = #tpu.dot_dimension_numbers<[1], [0], [0], [1], [0, 0, 1, 1], [], []>} : vector<8x8xbf16>, vector<8x128xbf16>, vector<8x128xf32> -> vector<8x128xf32>
    %40 = arith.truncf %32 : vector<8x8xf32> to vector<8x8xbf16>
    %cst_14 = arith.constant dense<0.000000e+00> : vector<8x128xf32>
    %41 = tpu.matmul %40, %6, %cst_14 {dimension_numbers = #tpu.dot_dimension_numbers<[1], [0], [0], [1], [0, 0, 1, 1], [], []>} : vector<8x8xbf16>, vector<8x128xbf16>, vector<8x128xf32> -> vector<8x128xf32>
    %42 = arith.addf %39, %41 : vector<8x128xf32>
    %43 = tpu.reciprocal %37 {approx = true} : vector<8x1xf32> -> vector<8x1xf32>
    %44 = vector.broadcast %43 : vector<8x1xf32> to vector<8x128xf32>
    %45 = arith.mulf %42, %44 : vector<8x128xf32>
    %46 = arith.truncf %45 : vector<8x128xf32> to vector<8x128xbf16>
    %c0_15 = arith.constant 0 : index
    %c0_16 = arith.constant 0 : index
    %c0_17 = arith.constant 0 : index
    %47 = vector.load %arg3[%c0_15, %c0_16, %c0_17] : memref<1x8x128xbf16, #tpu.memory_space<vmem>>, vector<1x8x128xbf16>
    %48 = vector.shape_cast %47 : vector<1x8x128xbf16> to vector<8x128xbf16>
    %49 = vector.shape_cast %46 : vector<8x128xbf16> to vector<1x8x128xbf16>
    tpu.vector_store %arg3[%c0_15, %c0_16, %c0_17], %49 {strides = array<i32>} : memref<1x8x128xbf16, #tpu.memory_space<vmem>>, vector<1x8x128xbf16>,
    return
  }
  func.func @transform_0(%arg0: i32) -> (i32, i32, i32) {
    %c0_i32 = arith.constant 0 : i32
    %c0_i32_0 = arith.constant 0 : i32
    %c0_i32_1 = arith.constant 0 : i32
    return %arg0, %c0_i32, %c0_i32_0 : i32, i32, i32
  }
  func.func @transform_1(%arg0: i32) -> (i32, i32, i32) {
    %c0_i32 = arith.constant 0 : i32
    %c0_i32_0 = arith.constant 0 : i32
    %c0_i32_1 = arith.constant 0 : i32
    return %arg0, %c0_i32, %c0_i32_0 : i32, i32, i32
  }
  func.func @transform_2(%arg0: i32) -> (i32, i32, i32) {
    %c0_i32 = arith.constant 0 : i32
    %c0_i32_0 = arith.constant 0 : i32
    %c0_i32_1 = arith.constant 0 : i32
    return %arg0, %c0_i32, %c0_i32_0 : i32, i32, i32
  }
}

module attributes {stable_mosaic.version = 11 : i64} {
  func.func @_ffn_block_kernel(%arg0: i32, %arg1: i32, %arg2: memref<16x128xbf16, #tpu.memory_space<vmem>>, %arg3: memref<128x256xbf16, #tpu.memory_space<vmem>>, %arg4: memref<256x128xbf16, #tpu.memory_space<vmem>>, %arg5: memref<1x128xf32, #tpu.memory_space<vmem>>, %arg6: memref<1x128xf32, #tpu.memory_space<vmem>>, %arg7: memref<16x128xbf16, #tpu.memory_space<vmem>>, %arg8: memref<16x128xf32, #tpu.memory_space<vmem>>) attributes {dimension_semantics = [#tpu.dimension_semantics<parallel>, #tpu.dimension_semantics<arbitrary>], iteration_bounds = array<i64: 1, 1>, scalar_prefetch = 0 : i64, scratch_operands = 1 : i64, tpu.core_type = #tpu.core_type<tc>, window_params = [{transform_indices = @transform_0, window_bounds = array<i64: 16, 128>}, {transform_indices = @transform_1, window_bounds = array<i64: 128, 256>}, {transform_indices = @transform_2, window_bounds = array<i64: 256, 128>}, {pipeline_mode = #tpu.pipeline_mode<synchronous>, transform_indices = @transform_3, window_bounds = array<i64: 1, 128>}, {pipeline_mode = #tpu.pipeline_mode<synchronous>, transform_indices = @transform_4, window_bounds = array<i64: 1, 128>}, {transform_indices = @transform_5, window_bounds = array<i64: 16, 128>}]} {
    %c0_i32 = arith.constant 0 : i32
    %0 = arith.cmpi eq, %arg1, %c0_i32 : i32
    %1 = arith.extui %0 : i1 to i32
    %c0_i32_0 = arith.constant 0 : i32
    %2 = arith.cmpi ne, %1, %c0_i32_0 : i32
    scf.if %2 {
      %cst_14 = arith.constant 0.000000e+00 : f32
      %17 = vector.broadcast %cst_14 : f32 to vector<16x128xf32>
      %c0_15 = arith.constant 0 : index
      %c0_16 = arith.constant 0 : index
      %18 = vector.load %arg8[%c0_15, %c0_16] : memref<16x128xf32, #tpu.memory_space<vmem>>, vector<16x128xf32>
      tpu.vector_store %arg8[%c0_15, %c0_16], %17 {strides = array<i32>} : memref<16x128xf32, #tpu.memory_space<vmem>>, vector<16x128xf32>,
    } else {
    }
    %c0 = arith.constant 0 : index
    %c0_1 = arith.constant 0 : index
    %3 = vector.load %arg2[%c0, %c0_1] : memref<16x128xbf16, #tpu.memory_space<vmem>>, vector<16x128xbf16>
    %c0_2 = arith.constant 0 : index
    %c0_3 = arith.constant 0 : index
    %4 = vector.load %arg3[%c0_2, %c0_3] : memref<128x256xbf16, #tpu.memory_space<vmem>>, vector<128x256xbf16>
    %cst = arith.constant dense<0.000000e+00> : vector<16x256xf32>
    %5 = tpu.matmul %3, %4, %cst {dimension_numbers = #tpu.dot_dimension_numbers<[1], [0], [0], [1], [0, 0, 1, 1], [], []>} : vector<16x128xbf16>, vector<128x256xbf16>, vector<16x256xf32> -> vector<16x256xf32>
    %cst_4 = arith.constant 0.000000e+00 : f32
    %6 = vector.broadcast %cst_4 : f32 to vector<16x256xf32>
    %7 = arith.maximumf %5, %6 : vector<16x256xf32>
    %c0_5 = arith.constant 0 : index
    %c0_6 = arith.constant 0 : index
    %8 = vector.load %arg8[%c0_5, %c0_6] : memref<16x128xf32, #tpu.memory_space<vmem>>, vector<16x128xf32>
    %9 = arith.truncf %7 : vector<16x256xf32> to vector<16x256xbf16>
    %c0_7 = arith.constant 0 : index
    %c0_8 = arith.constant 0 : index
    %10 = vector.load %arg4[%c0_7, %c0_8] : memref<256x128xbf16, #tpu.memory_space<vmem>>, vector<256x128xbf16>
    %cst_9 = arith.constant dense<0.000000e+00> : vector<16x128xf32>
    %11 = tpu.matmul %9, %10, %cst_9 {dimension_numbers = #tpu.dot_dimension_numbers<[1], [0], [0], [1], [0, 0, 1, 1], [], []>} : vector<16x256xbf16>, vector<256x128xbf16>, vector<16x128xf32> -> vector<16x128xf32>
    %12 = arith.addf %8, %11 : vector<16x128xf32>
    %c0_10 = arith.constant 0 : index
    %c0_11 = arith.constant 0 : index
    %13 = vector.load %arg8[%c0_10, %c0_11] : memref<16x128xf32, #tpu.memory_space<vmem>>, vector<16x128xf32>
    tpu.vector_store %arg8[%c0_10, %c0_11], %12 {strides = array<i32>} : memref<16x128xf32, #tpu.memory_space<vmem>>, vector<16x128xf32>,
    %c0_i32_12 = arith.constant 0 : i32
    %14 = arith.cmpi eq, %arg1, %c0_i32_12 : i32
    %15 = arith.extui %14 : i1 to i32
    %c0_i32_13 = arith.constant 0 : i32
    %16 = arith.cmpi ne, %15, %c0_i32_13 : i32
    scf.if %16 {
      %c0_14 = arith.constant 0 : index
      %c0_15 = arith.constant 0 : index
      %17 = vector.load %arg2[%c0_14, %c0_15] : memref<16x128xbf16, #tpu.memory_space<vmem>>, vector<16x128xbf16>
      %18 = arith.extf %17 : vector<16x128xbf16> to vector<16x128xf32>
      %c0_16 = arith.constant 0 : index
      %c0_17 = arith.constant 0 : index
      %19 = vector.load %arg8[%c0_16, %c0_17] : memref<16x128xf32, #tpu.memory_space<vmem>>, vector<16x128xf32>
      %20 = arith.addf %18, %19 : vector<16x128xf32>
      %cst_18 = arith.constant dense<0.000000e+00> : vector<16xf32>
      %21 = vector.multi_reduction <add>, %20, %cst_18 [1] : vector<16x128xf32> to vector<16xf32>
      %22 = vector.shape_cast %21 : vector<16xf32> to vector<16x1xf32>
      %cst_19 = arith.constant 1.280000e+02 : f32
      %23 = vector.broadcast %cst_19 : f32 to vector<16x1xf32>
      %24 = arith.divf %22, %23 : vector<16x1xf32>
      %25 = vector.broadcast %24 : vector<16x1xf32> to vector<16x128xf32>
      %26 = arith.subf %20, %25 : vector<16x128xf32>
      %27 = arith.mulf %26, %26 : vector<16x128xf32>
      %cst_20 = arith.constant dense<0.000000e+00> : vector<16xf32>
      %28 = vector.multi_reduction <add>, %27, %cst_20 [1] : vector<16x128xf32> to vector<16xf32>
      %29 = vector.shape_cast %28 : vector<16xf32> to vector<16x1xf32>
      %cst_21 = arith.constant 1.280000e+02 : f32
      %30 = vector.broadcast %cst_21 : f32 to vector<16x1xf32>
      %31 = arith.divf %29, %30 : vector<16x1xf32>
      %32 = vector.broadcast %24 : vector<16x1xf32> to vector<16x128xf32>
      %33 = arith.subf %20, %32 : vector<16x128xf32>
      %cst_22 = arith.constant 9.99999974E-6 : f32
      %34 = vector.broadcast %cst_22 : f32 to vector<16x1xf32>
      %35 = arith.addf %31, %34 : vector<16x1xf32>
      %36 = math.rsqrt %35 : vector<16x1xf32>
      %37 = vector.broadcast %36 : vector<16x1xf32> to vector<16x128xf32>
      %38 = arith.mulf %33, %37 : vector<16x128xf32>
      %c0_23 = arith.constant 0 : index
      %c0_24 = arith.constant 0 : index
      %39 = vector.load %arg5[%c0_23, %c0_24] : memref<1x128xf32, #tpu.memory_space<vmem>>, vector<1x128xf32>
      %40 = vector.broadcast %39 : vector<1x128xf32> to vector<16x128xf32>
      %41 = arith.mulf %38, %40 : vector<16x128xf32>
      %c0_25 = arith.constant 0 : index
      %c0_26 = arith.constant 0 : index
      %42 = vector.load %arg6[%c0_25, %c0_26] : memref<1x128xf32, #tpu.memory_space<vmem>>, vector<1x128xf32>
      %43 = vector.broadcast %42 : vector<1x128xf32> to vector<16x128xf32>
      %44 = arith.addf %41, %43 : vector<16x128xf32>
      %45 = arith.truncf %44 : vector<16x128xf32> to vector<16x128xbf16>
      %c0_27 = arith.constant 0 : index
      %c0_28 = arith.constant 0 : index
      %46 = vector.load %arg7[%c0_27, %c0_28] : memref<16x128xbf16, #tpu.memory_space<vmem>>, vector<16x128xbf16>
      tpu.vector_store %arg7[%c0_27, %c0_28], %45 {strides = array<i32>} : memref<16x128xbf16, #tpu.memory_space<vmem>>, vector<16x128xbf16>,
    } else {
    }
    return
  }
  func.func @transform_0(%arg0: i32, %arg1: i32) -> (i32, i32) {
    %c0_i32 = arith.constant 0 : i32
    %c0_i32_0 = arith.constant 0 : i32
    return %arg0, %c0_i32 : i32, i32
  }
  func.func @transform_1(%arg0: i32, %arg1: i32) -> (i32, i32) {
    %c0_i32 = arith.constant 0 : i32
    %c0_i32_0 = arith.constant 0 : i32
    return %c0_i32, %arg1 : i32, i32
  }
  func.func @transform_2(%arg0: i32, %arg1: i32) -> (i32, i32) {
    %c0_i32 = arith.constant 0 : i32
    %c0_i32_0 = arith.constant 0 : i32
    return %arg1, %c0_i32 : i32, i32
  }
  func.func @transform_3(%arg0: i32, %arg1: i32) -> (i32, i32) {
    %c0_i32 = arith.constant 0 : i32
    %c0_i32_0 = arith.constant 0 : i32
    %c0_i32_1 = arith.constant 0 : i32
    return %c0_i32, %c0_i32_0 : i32, i32
  }
  func.func @transform_4(%arg0: i32, %arg1: i32) -> (i32, i32) {
    %c0_i32 = arith.constant 0 : i32
    %c0_i32_0 = arith.constant 0 : i32
    %c0_i32_1 = arith.constant 0 : i32
    return %c0_i32, %c0_i32_0 : i32, i32
  }
  func.func @transform_5(%arg0: i32, %arg1: i32) -> (i32, i32) {
    %c0_i32 = arith.constant 0 : i32
    %c0_i32_0 = arith.constant 0 : i32
    return %arg0, %c0_i32 : i32, i32
  }
}

module attributes {stable_mosaic.version = 11 : i64} {
  func.func @_nll_kernel(%arg0: i32, %arg1: i32, %arg2: memref<16x1xi32, #tpu.memory_space<vmem>>, %arg3: memref<16x128xbf16, #tpu.memory_space<vmem>>, %arg4: memref<512x128xbf16, #tpu.memory_space<vmem>>, %arg5: memref<16x1xf32, #tpu.memory_space<vmem>>, %arg6: memref<16x1xf32, #tpu.memory_space<vmem>>, %arg7: memref<16x1xf32, #tpu.memory_space<vmem>>, %arg8: memref<16x1xf32, #tpu.memory_space<vmem>>) attributes {dimension_semantics = [#tpu.dimension_semantics<parallel>, #tpu.dimension_semantics<arbitrary>], iteration_bounds = array<i64: 1, 1>, scalar_prefetch = 0 : i64, scratch_operands = 3 : i64, tpu.core_type = #tpu.core_type<tc>, window_params = [{transform_indices = @transform_0, window_bounds = array<i64: 16, 1>}, {transform_indices = @transform_1, window_bounds = array<i64: 16, 128>}, {transform_indices = @transform_2, window_bounds = array<i64: 512, 128>}, {transform_indices = @transform_3, window_bounds = array<i64: 16, 1>}]} {
    %c0_i32 = arith.constant 0 : i32
    %0 = arith.cmpi eq, %arg1, %c0_i32 : i32
    %1 = arith.extui %0 : i1 to i32
    %c0_i32_0 = arith.constant 0 : i32
    %2 = arith.cmpi ne, %1, %c0_i32_0 : i32
    scf.if %2 {
      %cst_26 = arith.constant -1.000000e+30 : f32
      %43 = vector.broadcast %cst_26 : f32 to vector<16x1xf32>
      %c0_27 = arith.constant 0 : index
      %c0_28 = arith.constant 0 : index
      %44 = vector.load %arg6[%c0_27, %c0_28] : memref<16x1xf32, #tpu.memory_space<vmem>>, vector<16x1xf32>
      tpu.vector_store %arg6[%c0_27, %c0_28], %43 {strides = array<i32>} : memref<16x1xf32, #tpu.memory_space<vmem>>, vector<16x1xf32>,
      %cst_29 = arith.constant 0.000000e+00 : f32
      %45 = vector.broadcast %cst_29 : f32 to vector<16x1xf32>
      %c0_30 = arith.constant 0 : index
      %c0_31 = arith.constant 0 : index
      %46 = vector.load %arg7[%c0_30, %c0_31] : memref<16x1xf32, #tpu.memory_space<vmem>>, vector<16x1xf32>
      tpu.vector_store %arg7[%c0_30, %c0_31], %45 {strides = array<i32>} : memref<16x1xf32, #tpu.memory_space<vmem>>, vector<16x1xf32>,
      %cst_32 = arith.constant 0.000000e+00 : f32
      %47 = vector.broadcast %cst_32 : f32 to vector<16x1xf32>
      %c0_33 = arith.constant 0 : index
      %c0_34 = arith.constant 0 : index
      %48 = vector.load %arg8[%c0_33, %c0_34] : memref<16x1xf32, #tpu.memory_space<vmem>>, vector<16x1xf32>
      tpu.vector_store %arg8[%c0_33, %c0_34], %47 {strides = array<i32>} : memref<16x1xf32, #tpu.memory_space<vmem>>, vector<16x1xf32>,
    } else {
    }
    %c0 = arith.constant 0 : index
    %c0_1 = arith.constant 0 : index
    %3 = vector.load %arg3[%c0, %c0_1] : memref<16x128xbf16, #tpu.memory_space<vmem>>, vector<16x128xbf16>
    %c0_2 = arith.constant 0 : index
    %c0_3 = arith.constant 0 : index
    %4 = vector.load %arg4[%c0_2, %c0_3] : memref<512x128xbf16, #tpu.memory_space<vmem>>, vector<512x128xbf16>
    %cst = arith.constant dense<0.000000e+00> : vector<16x512xf32>
    %5 = tpu.matmul %3, %4, %cst {dimension_numbers = #tpu.dot_dimension_numbers<[1], [1], [0], [0], [0, 0, 1, 0], [], []>} : vector<16x128xbf16>, vector<512x128xbf16>, vector<16x512xf32> -> vector<16x512xf32>
    %6 = tpu.iota {dimensions = array<i32: 1>} : vector<16x512xi32>
    %c512_i32 = arith.constant 512 : i32
    %7 = arith.muli %arg1, %c512_i32 : i32
    %8 = vector.broadcast %7 : i32 to vector<16x512xi32>
    %9 = arith.addi %6, %8 : vector<16x512xi32>
    %c512_i32_4 = arith.constant 512 : i32
    %10 = vector.broadcast %c512_i32_4 : i32 to vector<16x512xi32>
    %11 = arith.cmpi slt, %9, %10 : vector<16x512xi32>
    %cst_5 = arith.constant -1.000000e+30 : f32
    %12 = vector.broadcast %cst_5 : f32 to vector<16x512xf32>
    %13 = arith.select %11, %5, %12 : vector<16x512xi1>, vector<16x512xf32>
    %c0_6 = arith.constant 0 : index
    %c0_7 = arith.constant 0 : index
    %14 = vector.load %arg2[%c0_6, %c0_7] : memref<16x1xi32, #tpu.memory_space<vmem>>, vector<16x1xi32>
    %c0_8 = arith.constant 0 : index
    %c0_9 = arith.constant 0 : index
    %15 = vector.load %arg8[%c0_8, %c0_9] : memref<16x1xf32, #tpu.memory_space<vmem>>, vector<16x1xf32>
    %16 = vector.broadcast %14 : vector<16x1xi32> to vector<16x512xi32>
    %17 = arith.cmpi eq, %9, %16 : vector<16x512xi32>
    %cst_10 = arith.constant 0.000000e+00 : f32
    %18 = vector.broadcast %cst_10 : f32 to vector<16x512xf32>
    %19 = arith.select %17, %13, %18 : vector<16x512xi1>, vector<16x512xf32>
    %cst_11 = arith.constant dense<0.000000e+00> : vector<16xf32>
    %20 = vector.multi_reduction <add>, %19, %cst_11 [1] : vector<16x512xf32> to vector<16xf32>
    %21 = vector.shape_cast %20 : vector<16xf32> to vector<16x1xf32>
    %22 = arith.addf %15, %21 : vector<16x1xf32>
    %c0_12 = arith.constant 0 : index
    %c0_13 = arith.constant 0 : index
    %23 = vector.load %arg8[%c0_12, %c0_13] : memref<16x1xf32, #tpu.memory_space<vmem>>, vector<16x1xf32>
    tpu.vector_store %arg8[%c0_12, %c0_13], %22 {strides = array<i32>} : memref<16x1xf32, #tpu.memory_space<vmem>>, vector<16x1xf32>,
    %c0_14 = arith.constant 0 : index
    %c0_15 = arith.constant 0 : index
    %24 = vector.load %arg6[%c0_14, %c0_15] : memref<16x1xf32, #tpu.memory_space<vmem>>, vector<16x1xf32>
    %cst_16 = arith.constant dense<0xFF800000> : vector<16xf32>
    %25 = vector.multi_reduction <maximumf>, %13, %cst_16 [1] : vector<16x512xf32> to vector<16xf32>
    %26 = vector.shape_cast %25 : vector<16xf32> to vector<16x1xf32>
    %27 = arith.maximumf %24, %26 : vector<16x1xf32>
    %28 = arith.subf %24, %27 : vector<16x1xf32>
    %29 = math.exp %28 : vector<16x1xf32>
    %c0_17 = arith.constant 0 : index
    %c0_18 = arith.constant 0 : index
    %30 = vector.load %arg7[%c0_17, %c0_18] : memref<16x1xf32, #tpu.memory_space<vmem>>, vector<16x1xf32>
    %31 = arith.mulf %29, %30 : vector<16x1xf32>
    %32 = vector.broadcast %27 : vector<16x1xf32> to vector<16x512xf32>
    %33 = arith.subf %13, %32 : vector<16x512xf32>
    %34 = math.exp %33 : vector<16x512xf32>
    %cst_19 = arith.constant dense<0.000000e+00> : vector<16xf32>
    %35 = vector.multi_reduction <add>, %34, %cst_19 [1] : vector<16x512xf32> to vector<16xf32>
    %36 = vector.shape_cast %35 : vector<16xf32> to vector<16x1xf32>
    %37 = arith.addf %31, %36 : vector<16x1xf32>
    %c0_20 = arith.constant 0 : index
    %c0_21 = arith.constant 0 : index
    %38 = vector.load %arg7[%c0_20, %c0_21] : memref<16x1xf32, #tpu.memory_space<vmem>>, vector<16x1xf32>
    tpu.vector_store %arg7[%c0_20, %c0_21], %37 {strides = array<i32>} : memref<16x1xf32, #tpu.memory_space<vmem>>, vector<16x1xf32>,
    %c0_22 = arith.constant 0 : index
    %c0_23 = arith.constant 0 : index
    %39 = vector.load %arg6[%c0_22, %c0_23] : memref<16x1xf32, #tpu.memory_space<vmem>>, vector<16x1xf32>
    tpu.vector_store %arg6[%c0_22, %c0_23], %27 {strides = array<i32>} : memref<16x1xf32, #tpu.memory_space<vmem>>, vector<16x1xf32>,
    %c0_i32_24 = arith.constant 0 : i32
    %40 = arith.cmpi eq, %arg1, %c0_i32_24 : i32
    %41 = arith.extui %40 : i1 to i32
    %c0_i32_25 = arith.constant 0 : i32
    %42 = arith.cmpi ne, %41, %c0_i32_25 : i32
    scf.if %42 {
      %c0_26 = arith.constant 0 : index
      %c0_27 = arith.constant 0 : index
      %43 = vector.load %arg6[%c0_26, %c0_27] : memref<16x1xf32, #tpu.memory_space<vmem>>, vector<16x1xf32>
      %c0_28 = arith.constant 0 : index
      %c0_29 = arith.constant 0 : index
      %44 = vector.load %arg7[%c0_28, %c0_29] : memref<16x1xf32, #tpu.memory_space<vmem>>, vector<16x1xf32>
      %45 = math.log %44 : vector<16x1xf32>
      %46 = arith.addf %43, %45 : vector<16x1xf32>
      %c0_30 = arith.constant 0 : index
      %c0_31 = arith.constant 0 : index
      %47 = vector.load %arg8[%c0_30, %c0_31] : memref<16x1xf32, #tpu.memory_space<vmem>>, vector<16x1xf32>
      %48 = arith.subf %46, %47 : vector<16x1xf32>
      %c0_32 = arith.constant 0 : index
      %c0_33 = arith.constant 0 : index
      %49 = vector.load %arg5[%c0_32, %c0_33] : memref<16x1xf32, #tpu.memory_space<vmem>>, vector<16x1xf32>
      tpu.vector_store %arg5[%c0_32, %c0_33], %48 {strides = array<i32>} : memref<16x1xf32, #tpu.memory_space<vmem>>, vector<16x1xf32>,
    } else {
    }
    return
  }
  func.func @transform_0(%arg0: i32, %arg1: i32) -> (i32, i32) {
    %c0_i32 = arith.constant 0 : i32
    %c0_i32_0 = arith.constant 0 : i32
    return %arg0, %c0_i32 : i32, i32
  }
  func.func @transform_1(%arg0: i32, %arg1: i32) -> (i32, i32) {
    %c0_i32 = arith.constant 0 : i32
    %c0_i32_0 = arith.constant 0 : i32
    return %arg0, %c0_i32 : i32, i32
  }
  func.func @transform_2(%arg0: i32, %arg1: i32) -> (i32, i32) {
    %c0_i32 = arith.constant 0 : i32
    %c0_i32_0 = arith.constant 0 : i32
    return %arg1, %c0_i32 : i32, i32
  }
  func.func @transform_3(%arg0: i32, %arg1: i32) -> (i32, i32) {
    %c0_i32 = arith.constant 0 : i32
    %c0_i32_0 = arith.constant 0 : i32
    return %arg0, %c0_i32 : i32, i32
  }
}

</mosaic_0001>

<llo_original>
// kernel: blur_forward.7
$region0: #{blur_forward.7}
  #allocation0 [shape = 'u32[]', space=smem, size = 0x4, offset = 0x4, fixed_abs, tag = 'smem constant byte address 0x4 - core index']
  #allocation1 [shape = 'u32[144,128]{1,0:T(1,128)}', space=vmem, size = 0x12000, scoped, tag = 'internal scratch']
  %s0 = inlined_call_operand.vmem [shape: bf16[16,128], index: 0, kind: input, shape index: {}]
  %s1 = inlined_call_operand.vmem [shape: bf16[128,256], index: 1, kind: input, shape index: {}]
  %s2 = inlined_call_operand.vmem [shape: bf16[16,256], index: 2, kind: output, shape index: {}]
  %s3 = sld [smem:[#allocation0]]
  $region18: #{blur_forward.7} parent=0
    _
  %s5 = ssub.s32 1, %s3
  %s6 = scalar_select 0, %s5, %s3
  // Predicated region
  $region2: #{blur_forward.7} parent=0 // pred_check
    _
  $region3: #{blur_forward.7} parent=0 // pred_check_branch
    %8 = sbr.rel (0) target = $region5
  $region4: #{blur_forward.7} parent=0 // pred_region
    _
  $region5: #{blur_forward.7} parent=0 // pred_fallthru
    _
  // Predicated region
  $region6: #{blur_forward.7} parent=0 // pred_check
    _
  $region7: #{blur_forward.7} parent=0 // pred_check_branch
    %10 = sbr.rel (0) target = $region9
  $region8: #{blur_forward.7} parent=0 // pred_region
    _
  $region9: #{blur_forward.7} parent=0 // pred_fallthru
    _
  %v12 = vld [vmem:[%s0] sm:$0xf]
  %v13 = vld [vmem:[%s0 + $0x4] sm:$0xf]
  %v14 = vld [vmem:[%s1] sm:$0xff]
  %v15 = vld [vmem:[%s1 + $0x8] sm:$0xff]
  %v16 = vld [vmem:[%s1 + $0x10] sm:$0xff]
  %v17 = vld [vmem:[%s1 + $0x18] sm:$0xff]
  %v18 = vld [vmem:[%s1 + $0x20] sm:$0xff]
  %v19 = vld [vmem:[%s1 + $0x28] sm:$0xff]
  %v20 = vld [vmem:[%s1 + $0x30] sm:$0xff]
  %v21 = vld [vmem:[%s1 + $0x38] sm:$0xff]
  %v22 = vld [vmem:[%s1 + $0x40] sm:$0xff]
  %v23 = vld [vmem:[%s1 + $0x48] sm:$0xff]
  %v24 = vld [vmem:[%s1 + $0x50] sm:$0xff]
  %v25 = vld [vmem:[%s1 + $0x58] sm:$0xff]
  %v26 = vld [vmem:[%s1 + $0x60] sm:$0xff]
  %v27 = vld [vmem:[%s1 + $0x68] sm:$0xff]
  %v28 = vld [vmem:[%s1 + $0x70] sm:$0xff]
  %v29 = vld [vmem:[%s1 + $0x78] sm:$0xff]
  %v32 = vunpack.c.l.b16 %v12
  %v33 = vunpack.c.l.b16 %v13
  %v34 = vpack.c.b16 %v33, %v32
  %v52 = vunpack.c.l.b16 %v14
  %v53 = vunpack.c.h.b16 %v14
  %v54 = vunpack.c.l.b16 %v15
  %v55 = vunpack.c.h.b16 %v15
  %v56 = vunpack.c.l.b16 %v16
  %v57 = vunpack.c.h.b16 %v16
  %v58 = vunpack.c.l.b16 %v17
  %v59 = vunpack.c.h.b16 %v17
  %v60 = vunpack.c.l.b16 %v18
  %v61 = vunpack.c.h.b16 %v18
  %v62 = vunpack.c.l.b16 %v19
  %v63 = vunpack.c.h.b16 %v19
  %v64 = vunpack.c.l.b16 %v20
  %v65 = vunpack.c.h.b16 %v20
  %v66 = vunpack.c.l.b16 %v21
  %v67 = vunpack.c.h.b16 %v21
  %v68 = vunpack.c.l.b16 %v22
  %v69 = vunpack.c.h.b16 %v22
  %v70 = vunpack.c.l.b16 %v23
  %v71 = vunpack.c.h.b16 %v23
  %v72 = vunpack.c.l.b16 %v24
  %v73 = vunpack.c.h.b16 %v24
  %v74 = vunpack.c.l.b16 %v25
  %v75 = vunpack.c.h.b16 %v25
  %v76 = vunpack.c.l.b16 %v26
  %v77 = vunpack.c.h.b16 %v26
  %v78 = vunpack.c.l.b16 %v27
  %v79 = vunpack.c.h.b16 %v27
  %v80 = vunpack.c.l.b16 %v28
  %v81 = vunpack.c.h.b16 %v28
  %v82 = vunpack.c.l.b16 %v29
  %v83 = vunpack.c.h.b16 %v29
  %v84 = vpack.c.b16 %v54, %v52
  %v85 = vpack.c.b16 %v55, %v53
  %v86 = vpack.c.b16 %v58, %v56
  %v87 = vpack.c.b16 %v59, %v57
  %v88 = vpack.c.b16 %v62, %v60
  %v89 = vpack.c.b16 %v63, %v61
  %v90 = vpack.c.b16 %v66, %v64
  %v91 = vpack.c.b16 %v67, %v65
  %v92 = vpack.c.b16 %v70, %v68
  %v93 = vpack.c.b16 %v71, %v69
  %v94 = vpack.c.b16 %v74, %v72
  %v95 = vpack.c.b16 %v75, %v73
  %v96 = vpack.c.b16 %v78, %v76
  %v97 = vpack.c.b16 %v79, %v77
  %v98 = vpack.c.b16 %v82, %v80
  %v99 = vpack.c.b16 %v83, %v81
  %116 = vmatprep.subr.bf16.mxu0 %v99
  %117 = vmatpush1.bf16.msra.mxu0 %v98
  %118 = vmatprep.subr.bf16.mxu0 %v97
  %119 = vmatpush1.bf16.msra.mxu0 %v96
  %120 = vmatprep.subr.bf16.mxu0 %v95
  %121 = vmatpush1.bf16.msra.mxu0 %v94
  %122 = vmatprep.subr.bf16.mxu0 %v93
  %123 = vmatpush1.bf16.msra.mxu0 %v92
  %124 = vmatprep.subr.bf16.mxu0 %v91
  %125 = vmatpush1.bf16.msra.mxu0 %v90
  %126 = vmatprep.subr.bf16.mxu0 %v89
  %127 = vmatpush1.bf16.msra.mxu0 %v88
  %128 = vmatprep.subr.bf16.mxu0 %v87
  %129 = vmatpush1.bf16.msra.mxu0 %v86
  %130 = vmatprep.subr.bf16.mxu0 %v85
  %131 = vmatpush1.bf16.msra.mxu0 %v84
  %132 = vmatprep.subr.bf16.mxu0 0
  %133 = vmatpush2.bf16.msra.mxu0 0
  %134 = vmatprep.subr.bf16.mxu0 0
  %135 = vmatpush2.bf16.msra.mxu0 0
  %136 = vmatprep.subr.bf16.mxu0 0
  %137 = vmatpush2.bf16.msra.mxu0 0
  %138 = vmatprep.subr.bf16.mxu0 0
  %139 = vmatpush2.bf16.msra.mxu0 0
  %140 = vmatprep.subr.bf16.mxu0 0
  %141 = vmatpush2.bf16.msra.mxu0 0
  %142 = vmatprep.subr.bf16.mxu0 0
  %143 = vmatpush2.bf16.msra.mxu0 0
  %144 = vmatprep.subr.bf16.mxu0 0
  %145 = vmatpush2.bf16.msra.mxu0 0
  %146 = vmatprep.subr.bf16.mxu0 0
  %147 = vmatpush2.bf16.msra.mxu0 0
  %148 = vmatprep.mubr.bf16.mxu0 0
  %149 = vmatmul.mubr.bf16.gmra.mxu0 %v34
  %v150 = vpop.f32.mrf.mxu0
  %v151 = vadd.f32 0.0, %v150
  %v152 = vpop.f32.mrf.mxu0
  %v153 = vadd.f32 0.0, %v152
  %v154 = vpop.f32.mrf.mxu0
  %v155 = vadd.f32 0.0, %v154
  %v156 = vpop.f32.mrf.mxu0
  %v157 = vadd.f32 0.0, %v156
  %158 = vdwg.mxu0
  %v159 = vpack.c.bf16 %v155, %v151
  %v160 = vpack.c.bf16 %v157, %v153
  %v163 = vunpack.c.l.b16 %v159
  %v164 = vunpack.c.l.b16 %v160
  %v165 = vunpack.c.h.b16 %v159
  %v166 = vunpack.c.h.b16 %v160
  %v167 = vpack.c.b16 %v164, %v163
  %v168 = vpack.c.b16 %v166, %v165
  %171 = vst [vmem:[%s2] sm:$0xff] %v167
  %172 = vst [vmem:[%s2 + $0x8] sm:$0xff] %v168
  // Predicated region
  $region10: #{blur_forward.7} parent=0 // pred_check
    _
  $region11: #{blur_forward.7} parent=0 // pred_check_branch
    %174 = sbr.rel (0) target = $region13
  $region12: #{blur_forward.7} parent=0 // pred_region
    _
  $region13: #{blur_forward.7} parent=0 // pred_fallthru
    _
  // Predicated region
  $region14: #{blur_forward.7} parent=0 // pred_check
    _
  $region15: #{blur_forward.7} parent=0 // pred_check_branch
    %176 = sbr.rel (0) target = $region17
  $region16: #{blur_forward.7} parent=0 // pred_region
    _
  $region17: #{blur_forward.7} parent=0 // pred_fallthru
    _

// kernel: blur_forward.9
$region0: #{blur_forward.9}
  #allocation0 [shape = 'u32[]', space=smem, size = 0x4, offset = 0x4, fixed_abs, tag = 'smem constant byte address 0x4 - core index']
  #allocation1 [shape = 'u32[144,128]{1,0:T(1,128)}', space=vmem, size = 0x12000, scoped, tag = 'internal scratch']
  %s0 = inlined_call_operand.vmem [shape: bf16[16,128], index: 0, kind: input, shape index: {}]
  %s1 = inlined_call_operand.vmem [shape: bf16[16,128], index: 1, kind: input, shape index: {}]
  %s2 = inlined_call_operand.vmem [shape: bf16[128,128], index: 2, kind: input, shape index: {}]
  %s3 = inlined_call_operand.vmem [shape: f32[1,128], index: 3, kind: input, shape index: {}]
  %s4 = inlined_call_operand.vmem [shape: f32[1,128], index: 4, kind: input, shape index: {}]
  %s5 = inlined_call_operand.vmem [shape: bf16[16,128], index: 5, kind: output, shape index: {}]
  %s6 = sld [smem:[#allocation0]]
  $region30: #{blur_forward.9} parent=0
    _
  %s8 = ssub.s32 1, %s6
  %s9 = scalar_select 0, %s8, %s6
  // Predicated region
  $region2: #{blur_forward.9} parent=0 // pred_check
    _
  $region3: #{blur_forward.9} parent=0 // pred_check_branch
    %11 = sbr.rel (0) target = $region5
  $region4: #{blur_forward.9} parent=0 // pred_region
    _
  $region5: #{blur_forward.9} parent=0 // pred_fallthru
    _
  // Predicated region
  $region6: #{blur_forward.9} parent=0 // pred_check
    _
  $region7: #{blur_forward.9} parent=0 // pred_check_branch
    %13 = sbr.rel (0) target = $region9
  $region8: #{blur_forward.9} parent=0 // pred_region
    _
  $region9: #{blur_forward.9} parent=0 // pred_fallthru
    _
  // Predicated region
  $region10: #{blur_forward.9} parent=0 // pred_check
    _
  $region11: #{blur_forward.9} parent=0 // pred_check_branch
    %15 = sbr.rel (0) target = $region13
  $region12: #{blur_forward.9} parent=0 // pred_region
    _
  $region13: #{blur_forward.9} parent=0 // pred_fallthru
    _
  // Predicated region
  $region14: #{blur_forward.9} parent=0 // pred_check
    _
  $region15: #{blur_forward.9} parent=0 // pred_check_branch
    %17 = sbr.rel (0) target = $region17
  $region16: #{blur_forward.9} parent=0 // pred_region
    _
  $region17: #{blur_forward.9} parent=0 // pred_fallthru
    _
  // Predicated region
  $region18: #{blur_forward.9} parent=0 // pred_check
    _
  $region19: #{blur_forward.9} parent=0 // pred_check_branch
    %19 = sbr.rel (0) target = $region21
  $region20: #{blur_forward.9} parent=0 // pred_region
    _
  $region21: #{blur_forward.9} parent=0 // pred_fallthru
    _
  %v21 = vld [vmem:[%s0] sm:$0xf]
  %v22 = vld [vmem:[%s0 + $0x4] sm:$0xf]
  %v23 = vld [vmem:[%s2] sm:$0xf]
  %v24 = vld [vmem:[%s2 + $0x4] sm:$0xf]
  %v25 = vld [vmem:[%s2 + $0x8] sm:$0xf]
  %v26 = vld [vmem:[%s2 + $0xc] sm:$0xf]
  %v27 = vld [vmem:[%s2 + $0x10] sm:$0xf]
  %v28 = vld [vmem:[%s2 + $0x14] sm:$0xf]
  %v29 = vld [vmem:[%s2 + $0x18] sm:$0xf]
  %v30 = vld [vmem:[%s2 + $0x1c] sm:$0xf]
  %v31 = vld [vmem:[%s2 + $0x20] sm:$0xf]
  %v32 = vld [vmem:[%s2 + $0x24] sm:$0xf]
  %v33 = vld [vmem:[%s2 + $0x28] sm:$0xf]
  %v34 = vld [vmem:[%s2 + $0x2c] sm:$0xf]
  %v35 = vld [vmem:[%s2 + $0x30] sm:$0xf]
  %v36 = vld [vmem:[%s2 + $0x34] sm:$0xf]
  %v37 = vld [vmem:[%s2 + $0x38] sm:$0xf]
  %v38 = vld [vmem:[%s2 + $0x3c] sm:$0xf]
  %v41 = vunpack.c.l.b16 %v21
  %v42 = vunpack.c.l.b16 %v22
  %v43 = vpack.c.b16 %v42, %v41
  %v61 = vunpack.c.l.b16 %v23
  %v62 = vunpack.c.l.b16 %v24
  %v63 = vunpack.c.l.b16 %v25
  %v64 = vunpack.c.l.b16 %v26
  %v65 = vunpack.c.l.b16 %v27
  %v66 = vunpack.c.l.b16 %v28
  %v67 = vunpack.c.l.b16 %v29
  %v68 = vunpack.c.l.b16 %v30
  %v69 = vunpack.c.l.b16 %v31
  %v70 = vunpack.c.l.b16 %v32
  %v71 = vunpack.c.l.b16 %v33
  %v72 = vunpack.c.l.b16 %v34
  %v73 = vunpack.c.l.b16 %v35
  %v74 = vunpack.c.l.b16 %v36
  %v75 = vunpack.c.l.b16 %v37
  %v76 = vunpack.c.l.b16 %v38
  %v77 = vpack.c.b16 %v62, %v61
  %v78 = vpack.c.b16 %v64, %v63
  %v79 = vpack.c.b16 %v66, %v65
  %v80 = vpack.c.b16 %v68, %v67
  %v81 = vpack.c.b16 %v70, %v69
  %v82 = vpack.c.b16 %v72, %v71
  %v83 = vpack.c.b16 %v74, %v73
  %v84 = vpack.c.b16 %v76, %v75
  %93 = vmatprep.subr.bf16.mxu0 0
  %94 = vmatpush1.bf16.msra.mxu0 %v84
  %95 = vmatprep.subr.bf16.mxu0 0
  %96 = vmatpush1.bf16.msra.mxu0 %v83
  %97 = vmatprep.subr.bf16.mxu0 0
  %98 = vmatpush1.bf16.msra.mxu0 %v82
  %99 = vmatprep.subr.bf16.mxu0 0
  %100 = vmatpush1.bf16.msra.mxu0 %v81
  %101 = vmatprep.subr.bf16.mxu0 0
  %102 = vmatpush1.bf16.msra.mxu0 %v80
  %103 = vmatprep.subr.bf16.mxu0 0
  %104 = vmatpush1.bf16.msra.mxu0 %v79
  %105 = vmatprep.subr.bf16.mxu0 0
  %106 = vmatpush1.bf16.msra.mxu0 %v78
  %107 = vmatprep.subr.bf16.mxu0 0
  %108 = vmatpush1.bf16.msra.mxu0 %v77
  %109 = vmatprep.subr.bf16.mxu0 0
  %110 = vmatpush2.bf16.msra.mxu0 0
  %111 = vmatprep.subr.bf16.mxu0 0
  %112 = vmatpush2.bf16.msra.mxu0 0
  %113 = vmatprep.subr.bf16.mxu0 0
  %114 = vmatpush2.bf16.msra.mxu0 0
  %115 = vmatprep.subr.bf16.mxu0 0
  %116 = vmatpush2.bf16.msra.mxu0 0
  %117 = vmatprep.subr.bf16.mxu0 0
  %118 = vmatpush2.bf16.msra.mxu0 0
  %119 = vmatprep.subr.bf16.mxu0 0
  %120 = vmatpush2.bf16.msra.mxu0 0
  %121 = vmatprep.subr.bf16.mxu0 0
  %122 = vmatpush2.bf16.msra.mxu0 0
  %123 = vmatprep.subr.bf16.mxu0 0
  %124 = vmatpush2.bf16.msra.mxu0 0
  %125 = vmatprep.mubr.bf16.mxu0 0
  %126 = vmatmul.mubr.bf16.gmra.mxu0 %v43
  %v127 = vpop.f32.mrf.mxu0
  %v128 = vadd.f32 0.0, %v127
  %v129 = vpop.f32.mrf.mxu0
  %v130 = vpop.f32.mrf.mxu0
  %v131 = vadd.f32 0.0, %v130
  %v132 = vpop.f32.mrf.mxu0
  %133 = vdwg.mxu0
  %v134 = vld [vmem:[%s1] sm:$0xf]
  %v135 = vld [vmem:[%s1 + $0x4] sm:$0xf]
  %v136 = vunpack.c.l.bf16 %v134
  %v137 = vunpack.c.l.bf16 %v135
  %v138 = vadd.f32 %v136, %v128
  %v139 = vadd.f32 %v137, %v131
  %140 = vadd.xlane.f32.xlu0 %v138
  %v141 = vpop.xlane.xlu0 %140
  %142 = vadd.xlane.f32.xlu0 %v139
  %v143 = vpop.xlane.xlu0 %142
  %v144 = vrcp.pop 128.0
  %v145 = vmul.f32 %v141, %v144
  %v146 = vmul.f32 %v143, %v144
  %v147 = vsub.f32 %v138, %v145
  %v148 = vsub.f32 %v139, %v146
  %v149 = vmul.f32 %v147, %v147
  %v150 = vmul.f32 %v148, %v148
  %151 = vadd.xlane.f32.xlu0 %v149
  %v152 = vpop.xlane.xlu0 %151
  %153 = vadd.xlane.f32.xlu0 %v150
  %v154 = vpop.xlane.xlu0 %153
  %v155 = vmul.f32 %v152, %v144
  %v156 = vmul.f32 %v154, %v144
  %v157 = vadd.f32 %v155, 1e-05
  %v158 = vadd.f32 %v156, 1e-05
  %v159 = vrsqrt.pop %v157
  %v160 = vrsqrt.pop %v158
  %v161 = vmul.f32 %v147, %v159
  %v162 = vmul.f32 %v148, %v160
  %v163 = vld [vmem:[%s3] sm:$0x1]
  %v165 = vlaneseq
  %v166 = vshrl.u32 %v165, 7
  %v167 = vsub.s32 0, %v166
  %v168 = vrot.slane %v163, %v167
  %v170 = vmul.f32 %v161, %v168
  %v171 = vmul.f32 %v162, %v168
  %v172 = vld [vmem:[%s4] sm:$0x1]
  %v174 = vlaneseq
  %v175 = vshrl.u32 %v174, 7
  %v176 = vsub.s32 0, %v175
  %v177 = vrot.slane %v172, %v176
  %v179 = vadd.f32 %v170, %v177
  %v180 = vadd.f32 %v171, %v177
  %v181 = vpack.c.bf16 %v180, %v179
  %v183 = vunpack.c.l.b16 %v181
  %v184 = vunpack.c.h.b16 %v181
  %v185 = vpack.c.b16 %v183, %v183
  %v186 = vpack.c.b16 %v184, %v184
  %189 = vst [vmem:[%s5] sm:$0xf] %v185
  %190 = vst [vmem:[%s5 + $0x4] sm:$0xf] %v186
  // Predicated region
  $region22: #{blur_forward.9} parent=0 // pred_check
    _
  $region23: #{blur_forward.9} parent=0 // pred_check_branch
    %192 = sbr.rel (0) target = $region25
  $region24: #{blur_forward.9} parent=0 // pred_region
    _
  $region25: #{blur_forward.9} parent=0 // pred_fallthru
    _
  // Predicated region
  $region26: #{blur_forward.9} parent=0 // pred_check
    _
  $region27: #{blur_forward.9} parent=0 // pred_check_branch
    %194 = sbr.rel (0) target = $region29
  $region28: #{blur_forward.9} parent=0 // pred_region
    _
  $region29: #{blur_forward.9} parent=0 // pred_fallthru
    _

// kernel: blur_forward.6
$region0: #{blur_forward.6}
  #allocation0 [shape = 'u32[]', space=smem, size = 0x4, offset = 0x4, fixed_abs, tag = 'smem constant byte address 0x4 - core index']
  #allocation1 [shape = 'u32[144,128]{1,0:T(1,128)}', space=vmem, size = 0x12000, scoped, tag = 'internal scratch']
  %s0 = inlined_call_operand.vmem [shape: bf16[16,128], index: 0, kind: input, shape index: {}]
  %s1 = inlined_call_operand.hbm [shape: bf16[128,384], index: 1, kind: input, shape index: {}]
  %s2 = inlined_call_operand.vmem [shape: bf16[16,384], index: 2, kind: output, shape index: {}]
  %s3 = sld [smem:[#allocation0]]
  $region22: #{blur_forward.6} parent=0
    _
  %s5 = ssub.s32 1, %s3
  %s6 = scalar_select 0, %s5, %s3
  $region1: #{blur_forward.6} parent=0
    #allocation2 [shape = 'u8[98304]{0}', space=vmem, size = 0x18000, scoped, tag = 'input window, operand 1, single buffered']
    #allocation3 [shape = 's32[1]{0}', space=sflag, size = 0x4, scoped, tag = 'scoped memory for blur_forward.6']
    %7 = vsyncpa [#allocation3], 0
    // Predicated region
    $region2: #{blur_forward.6} parent=1 // pred_check
      _
    $region3: #{blur_forward.6} parent=1 // pred_check_branch
      %9 = sbr.rel (0) target = $region5
    $region4: #{blur_forward.6} parent=1 // pred_region
      _
    $region5: #{blur_forward.6} parent=1 // pred_fallthru
      _
    // Predicated region
    $region6: #{blur_forward.6} parent=1 // pred_check
      _
    $region7: #{blur_forward.6} parent=1 // pred_check_branch
      %11 = sbr.rel (0) target = $region9
    $region8: #{blur_forward.6} parent=1 // pred_region
      %s13 = ssub.s32 3072, 3072
      %14 = vsyncadd [#allocation3], %s13
      %s15 = sshll.u32 [#allocation2], 4
      %s16 = int_to_ptr.vmem [resolvable:$true] %s15
      %21 = dma.hbm_to_vmem [thread:$0]  %s1, 3072, %s16, [#allocation3], 192, 192, 12
    $region9: #{blur_forward.6} parent=1 // pred_fallthru
      _
    // Predicated region
    $region10: #{blur_forward.6} parent=1 // pred_check
      _
    $region11: #{blur_forward.6} parent=1 // pred_check_branch
      %23 = sbr.rel (0) target = $region13
    $region12: #{blur_forward.6} parent=1 // pred_region
      %24 = dma.done [#allocation3], 3072
    $region13: #{blur_forward.6} parent=1 // pred_fallthru
      _
    %v26 = vld [vmem:[%s0] sm:$0xf]
    %v27 = vld [vmem:[%s0 + $0x4] sm:$0xf]
    %v28 = vld [vmem:[#allocation2] sm:$0xff]
    %v29 = vld [vmem:[#allocation2 + $0x8] sm:$0xf]
    %v30 = vld [vmem:[#allocation2 + $0xc] sm:$0xff]
    %v31 = vld [vmem:[#allocation2 + $0x14] sm:$0xf]
    %v32 = vld [vmem:[#allocation2 + $0x18] sm:$0xff]
    %v33 = vld [vmem:[#allocation2 + $0x20] sm:$0xf]
    %v34 = vld [vmem:[#allocation2 + $0x24] sm:$0xff]
    %v35 = vld [vmem:[#allocation2 + $0x2c] sm:$0xf]
    %v36 = vld [vmem:[#allocation2 + $0x30] sm:$0xff]
    %v37 = vld [vmem:[#allocation2 + $0x38] sm:$0xf]
    %v38 = vld [vmem:[#allocation2 + $0x3c] sm:$0xff]
    %v39 = vld [vmem:[#allocation2 + $0x44] sm:$0xf]
    %v40 = vld [vmem:[#allocation2 + $0x48] sm:$0xff]
    %v41 = vld [vmem:[#allocation2 + $0x50] sm:$0xf]
    %v42 = vld [vmem:[#allocation2 + $0x54] sm:$0xff]
    %v43 = vld [vmem:[#allocation2 + $0x5c] sm:$0xf]
    %v44 = vld [vmem:[#allocation2 + $0x60] sm:$0xff]
    %v45 = vld [vmem:[#allocation2 + $0x68] sm:$0xf]
    %v46 = vld [vmem:[#allocation2 + $0x6c] sm:$0xff]
    %v47 = vld [vmem:[#allocation2 + $0x74] sm:$0xf]
    %v48 = vld [vmem:[#allocation2 + $0x78] sm:$0xff]
    %v49 = vld [vmem:[#allocation2 + $0x80] sm:$0xf]
    %v50 = vld [vmem:[#allocation2 + $0x84] sm:$0xff]
    %v51 = vld [vmem:[#allocation2 + $0x8c] sm:$0xf]
    %v52 = vld [vmem:[#allocation2 + $0x90] sm:$0xff]
    %v53 = vld [vmem:[#allocation2 + $0x98] sm:$0xf]
    %v54 = vld [vmem:[#allocation2 + $0x9c] sm:$0xff]
    %v55 = vld [vmem:[#allocation2 + $0xa4] sm:$0xf]
    %v56 = vld [vmem:[#allocation2 + $0xa8] sm:$0xff]
    %v57 = vld [vmem:[#allocation2 + $0xb0] sm:$0xf]
    %v58 = vld [vmem:[#allocation2 + $0xb4] sm:$0xff]
    %v59 = vld [vmem:[#allocation2 + $0xbc] sm:$0xf]
    %v62 = vunpack.c.l.b16 %v26
    %v63 = vunpack.c.l.b16 %v27
    %v64 = vpack.c.b16 %v63, %v62
    %v98 = vunpack.c.l.b16 %v28
    %v99 = vunpack.c.h.b16 %v28
    %v100 = vunpack.c.l.b16 %v29
    %v101 = vunpack.c.l.b16 %v30
    %v102 = vunpack.c.h.b16 %v30
    %v103 = vunpack.c.l.b16 %v31
    %v104 = vunpack.c.l.b16 %v32
    %v105 = vunpack.c.h.b16 %v32
    %v106 = vunpack.c.l.b16 %v33
    %v107 = vunpack.c.l.b16 %v34
    %v108 = vunpack.c.h.b16 %v34
    %v109 = vunpack.c.l.b16 %v35
    %v110 = vunpack.c.l.b16 %v36
    %v111 = vunpack.c.h.b16 %v36
    %v112 = vunpack.c.l.b16 %v37
    %v113 = vunpack.c.l.b16 %v38
    %v114 = vunpack.c.h.b16 %v38
    %v115 = vunpack.c.l.b16 %v39
    %v116 = vunpack.c.l.b16 %v40
    %v117 = vunpack.c.h.b16 %v40
    %v118 = vunpack.c.l.b16 %v41
    %v119 = vunpack.c.l.b16 %v42
    %v120 = vunpack.c.h.b16 %v42
    %v121 = vunpack.c.l.b16 %v43
    %v122 = vunpack.c.l.b16 %v44
    %v123 = vunpack.c.h.b16 %v44
    %v124 = vunpack.c.l.b16 %v45
    %v125 = vunpack.c.l.b16 %v46
    %v126 = vunpack.c.h.b16 %v46
    %v127 = vunpack.c.l.b16 %v47
    %v128 = vunpack.c.l.b16 %v48
    %v129 = vunpack.c.h.b16 %v48
    %v130 = vunpack.c.l.b16 %v49
    %v131 = vunpack.c.l.b16 %v50
    %v132 = vunpack.c.h.b16 %v50
    %v133 = vunpack.c.l.b16 %v51
    %v134 = vunpack.c.l.b16 %v52
    %v135 = vunpack.c.h.b16 %v52
    %v136 = vunpack.c.l.b16 %v53
    %v137 = vunpack.c.l.b16 %v54
    %v138 = vunpack.c.h.b16 %v54
    %v139 = vunpack.c.l.b16 %v55
    %v140 = vunpack.c.l.b16 %v56
    %v141 = vunpack.c.h.b16 %v56
    %v142 = vunpack.c.l.b16 %v57
    %v143 = vunpack.c.l.b16 %v58
    %v144 = vunpack.c.h.b16 %v58
    %v145 = vunpack.c.l.b16 %v59
    %v146 = vpack.c.b16 %v101, %v98
    %v147 = vpack.c.b16 %v102, %v99
    %v148 = vpack.c.b16 %v103, %v100
    %v149 = vpack.c.b16 %v107, %v104
    %v150 = vpack.c.b16 %v108, %v105
    %v151 = vpack.c.b16 %v109, %v106
    %v152 = vpack.c.b16 %v113, %v110
    %v153 = vpack.c.b16 %v114, %v111
    %v154 = vpack.c.b16 %v115, %v112
    %v155 = vpack.c.b16 %v119, %v116
    %v156 = vpack.c.b16 %v120, %v117
    %v157 = vpack.c.b16 %v121, %v118
    %v158 = vpack.c.b16 %v125, %v122
    %v159 = vpack.c.b16 %v126, %v123
    %v160 = vpack.c.b16 %v127, %v124
    %v161 = vpack.c.b16 %v131, %v128
    %v162 = vpack.c.b16 %v132, %v129
    %v163 = vpack.c.b16 %v133, %v130
    %v164 = vpack.c.b16 %v137, %v134
    %v165 = vpack.c.b16 %v138, %v135
    %v166 = vpack.c.b16 %v139, %v136
    %v167 = vpack.c.b16 %v143, %v140
    %v168 = vpack.c.b16 %v144, %v141
    %v169 = vpack.c.b16 %v145, %v142
    %194 = vmatprep.subr.bf16.mxu0 %v168
    %195 = vmatpush1.bf16.msra.mxu0 %v167
    %196 = vmatprep.subr.bf16.mxu0 %v165
    %197 = vmatpush1.bf16.msra.mxu0 %v164
    %198 = vmatprep.subr.bf16.mxu0 %v162
    %199 = vmatpush1.bf16.msra.mxu0 %v161
    %200 = vmatprep.subr.bf16.mxu0 %v159
    %201 = vmatpush1.bf16.msra.mxu0 %v158
    %202 = vmatprep.subr.bf16.mxu0 %v156
    %203 = vmatpush1.bf16.msra.mxu0 %v155
    %204 = vmatprep.subr.bf16.mxu0 %v153
    %205 = vmatpush1.bf16.msra.mxu0 %v152
    %206 = vmatprep.subr.bf16.mxu0 %v150
    %207 = vmatpush1.bf16.msra.mxu0 %v149
    %208 = vmatprep.subr.bf16.mxu0 %v147
    %209 = vmatpush1.bf16.msra.mxu0 %v146
    %210 = vmatprep.subr.bf16.mxu0 0
    %211 = vmatpush2.bf16.msra.mxu0 0
    %212 = vmatprep.subr.bf16.mxu0 0
    %213 = vmatpush2.bf16.msra.mxu0 0
    %214 = vmatprep.subr.bf16.mxu0 0
    %215 = vmatpush2.bf16.msra.mxu0 0
    %216 = vmatprep.subr.bf16.mxu0 0
    %217 = vmatpush2.bf16.msra.mxu0 0
    %218 = vmatprep.subr.bf16.mxu0 0
    %219 = vmatpush2.bf16.msra.mxu0 0
    %220 = vmatprep.subr.bf16.mxu0 0
    %221 = vmatpush2.bf16.msra.mxu0 0
    %222 = vmatprep.subr.bf16.mxu0 0
    %223 = vmatpush2.bf16.msra.mxu0 0
    %224 = vmatprep.subr.bf16.mxu0 0
    %225 = vmatpush2.bf16.msra.mxu0 0
    %226 = vmatprep.mubr.bf16.mxu0 0
    %227 = vmatmul.mubr.bf16.gmra.mxu0 %v64
    %v228 = vpop.f32.mrf.mxu0
    %v229 = vadd.f32 0.0, %v228
    %v230 = vpop.f32.mrf.mxu0
    %v231 = vadd.f32 0.0, %v230
    %v232 = vpop.f32.mrf.mxu0
    %v233 = vadd.f32 0.0, %v232
    %v234 = vpop.f32.mrf.mxu0
    %v235 = vadd.f32 0.0, %v234
    %236 = vdwg.mxu0
    %237 = vmatprep.subr.bf16.mxu0 0
    %238 = vmatpush1.bf16.msra.mxu0 %v169
    %239 = vmatprep.subr.bf16.mxu0 0
    %240 = vmatpush1.bf16.msra.mxu0 %v166
    %241 = vmatprep.subr.bf16.mxu0 0
    %242 = vmatpush1.bf16.msra.mxu0 %v163
    %243 = vmatprep.subr.bf16.mxu0 0
    %244 = vmatpush1.bf16.msra.mxu0 %v160
    %245 = vmatprep.subr.bf16.mxu0 0
    %246 = vmatpush1.bf16.msra.mxu0 %v157
    %247 = vmatprep.subr.bf16.mxu0 0
    %248 = vmatpush1.bf16.msra.mxu0 %v154
    %249 = vmatprep.subr.bf16.mxu0 0
    %250 = vmatpush1.bf16.msra.mxu0 %v151
    %251 = vmatprep.subr.bf16.mxu0 0
    %252 = vmatpush1.bf16.msra.mxu0 %v148
    %253 = vmatprep.subr.bf16.mxu0 0
    %254 = vmatpush2.bf16.msra.mxu0 0
    %255 = vmatprep.subr.bf16.mxu0 0
    %256 = vmatpush2.bf16.msra.mxu0 0
    %257 = vmatprep.subr.bf16.mxu0 0
    %258 = vmatpush2.bf16.msra.mxu0 0
    %259 = vmatprep.subr.bf16.mxu0 0
    %260 = vmatpush2.bf16.msra.mxu0 0
    %261 = vmatprep.subr.bf16.mxu0 0
    %262 = vmatpush2.bf16.msra.mxu0 0
    %263 = vmatprep.subr.bf16.mxu0 0
    %264 = vmatpush2.bf16.msra.mxu0 0
    %265 = vmatprep.subr.bf16.mxu0 0
    %266 = vmatpush2.bf16.msra.mxu0 0
    %267 = vmatprep.subr.bf16.mxu0 0
    %268 = vmatpush2.bf16.msra.mxu0 0
    %269 = vmatprep.mubr.bf16.mxu0 0
    %270 = vmatmul.mubr.bf16.gmra.mxu0 %v64
    %v271 = vpop.f32.mrf.mxu0
    %v272 = vadd.f32 0.0, %v271
    %v273 = vpop.f32.mrf.mxu0
    %v274 = vpop.f32.mrf.mxu0
    %v275 = vadd.f32 0.0, %v274
    %v276 = vpop.f32.mrf.mxu0
    %277 = vdwg.mxu0
    %v278 = vpack.c.bf16 %v233, %v229
    %v279 = vpack.c.bf16 %v235, %v231
    %v280 = vpack.c.bf16 %v275, %v272
    %v284 = vunpack.c.l.b16 %v278
    %v285 = vunpack.c.l.b16 %v279
    %v286 = vunpack.c.l.b16 %v280
    %v287 = vunpack.c.h.b16 %v278
    %v288 = vunpack.c.h.b16 %v279
    %v289 = vunpack.c.h.b16 %v280
    %v290 = vpack.c.b16 %v285, %v284
    %v291 = vpack.c.b16 %v286, %v286
    %v292 = vpack.c.b16 %v288, %v287
    %v293 = vpack.c.b16 %v289, %v289
    %298 = vst [vmem:[%s2] sm:$0xff] %v290
    %299 = vst [vmem:[%s2 + $0x8] sm:$0xf] %v291
    %300 = vst [vmem:[%s2 + $0xc] sm:$0xff] %v292
    %301 = vst [vmem:[%s2 + $0x14] sm:$0xf] %v293
    // Predicated region
    $region14: #{blur_forward.6} parent=1 // pred_check
      _
    $region15: #{blur_forward.6} parent=1 // pred_check_branch
      %303 = sbr.rel (0) target = $region17
    $region16: #{blur_forward.6} parent=1 // pred_region
      _
    $region17: #{blur_forward.6} parent=1 // pred_fallthru
      _
    // Predicated region
    $region18: #{blur_forward.6} parent=1 // pred_check
      _
    $region19: #{blur_forward.6} parent=1 // pred_check_branch
      %305 = sbr.rel (0) target = $region21
    $region20: #{blur_forward.6} parent=1 // pred_region
      _
    $region21: #{blur_forward.6} parent=1 // pred_fallthru
      _
    %306 = vsyncpa [#allocation3], 1

// kernel: blur_forward.8
$region0: #{blur_forward.8}
  #allocation0 [shape = 'u32[]', space=smem, size = 0x4, offset = 0x4, fixed_abs, tag = 'smem constant byte address 0x4 - core index']
  #allocation1 [shape = 'u32[144,128]{1,0:T(1,128)}', space=vmem, size = 0x12000, scoped, tag = 'internal scratch']
  %s0 = inlined_call_operand.vmem [shape: bf16[2,8,384], index: 0, kind: input, shape index: {}]
  %s1 = inlined_call_operand.vmem [shape: bf16[2,8,256], index: 1, kind: input, shape index: {}]
  %s2 = inlined_call_operand.vmem [shape: bf16[2,8,128], index: 2, kind: output, shape index: {}]
  %s3 = sld [smem:[#allocation0]]
  $region41: #{blur_forward.8} parent=0
    _
  %s5 = ssub.s32 1, %s3
  %s6 = scalar_select 0, %s5, %s3
  loop: start=0, step=1, limit=4
  $region2: #{blur_forward.8} parent=0 // loop_pre_header
    _
  $region3: #{blur_forward.8} parent=0 // loop_header
    %s8 = sphi 0, %s12
    %p9 = scmp.ge.s32.totalorder %s8, 4
    %s18 = sphi 0, %s20
    %s21 = sphi 0, %s18
    %s22 = sphi 0, %s21
    %s38 = sphi 0, %s22
    %s44 = sphi 0, %s46
    %s47 = sphi 0, %s44
    %s48 = sphi 0, %s47
    %s64 = sphi 0, %s48
    %s70 = sphi 0, %s72
    %s73 = sphi 0, %s70
    %s74 = sphi 0, %s73
    %s90 = sphi 0, %s74
  $region4: #{blur_forward.8} parent=0 // loop_header_branch
    %11 = sbr.rel (%p9) target = $region8
  $region5: #{blur_forward.8} parent=0 // loop_body
    %s13 = ssub.s32 %s8, 1
    %s14 = ssub.s32 %s8, 2
    %s15 = sadd.s32 %s8, 1
    %s16 = ssub.s32 %s8, %s15
    %p17 = scmp.eq.s32.totalorder %s16, 0
    %s19 = sadd.s32 %s18, 1
    %s20 = scalar_select %p17, %s18, %s19
    %p23 = pneg %p17
    %p24 = scmp.eq.s32.totalorder %s8, 1
    %p25 = por %p23, %p24
    %p26 = scmp.ne.s32.totalorder %s18, %s21
    %p27 = scmp.eq.s32.totalorder %s8, 0
    %p28 = por %p26, %p27
    %p29 = scmp.ne.s32.totalorder %s18, %s21
    %p30 = scmp.eq.s32.totalorder %s13, 1
    %p31 = por %p29, %p30
    %p32 = scmp.ne.s32.totalorder %s21, %s22
    %p33 = scmp.eq.s32.totalorder %s13, 0
    %p34 = por %p32, %p33
    %p35 = scmp.ne.s32.totalorder %s21, %s22
    %p36 = scmp.eq.s32.totalorder %s14, 1
    %p37 = por %p35, %p36
    %p39 = scmp.ne.s32.totalorder %s22, %s38
    %p40 = scmp.eq.s32.totalorder %s14, 0
    %p41 = por %p39, %p40
    %s42 = ssub.s32 %s8, %s15
    %p43 = scmp.eq.s32.totalorder %s42, 0
    %s45 = sadd.s32 %s44, 1
    %s46 = scalar_select %p43, %s44, %s45
    %p49 = pneg %p43
    %p50 = scmp.eq.s32.totalorder %s8, 1
    %p51 = por %p49, %p50
    %p52 = scmp.ne.s32.totalorder %s44, %s47
    %p53 = scmp.eq.s32.totalorder %s8, 0
    %p54 = por %p52, %p53
    %p55 = scmp.ne.s32.totalorder %s44, %s47
    %p56 = scmp.eq.s32.totalorder %s13, 1
    %p57 = por %p55, %p56
    %p58 = scmp.ne.s32.totalorder %s47, %s48
    %p59 = scmp.eq.s32.totalorder %s13, 0
    %p60 = por %p58, %p59
    %p61 = scmp.ne.s32.totalorder %s47, %s48
    %p62 = scmp.eq.s32.totalorder %s14, 1
    %p63 = por %p61, %p62
    %p65 = scmp.ne.s32.totalorder %s48, %s64
    %p66 = scmp.eq.s32.totalorder %s14, 0
    %p67 = por %p65, %p66
    %s68 = ssub.s32 %s8, %s15
    %p69 = scmp.eq.s32.totalorder %s68, 0
    %s71 = sadd.s32 %s70, 1
    %s72 = scalar_select %p69, %s70, %s71
    %p75 = pneg %p69
    %p76 = scmp.eq.s32.totalorder %s8, 1
    %p77 = por %p75, %p76
    %p78 = scmp.ne.s32.totalorder %s70, %s73
    %p79 = scmp.eq.s32.totalorder %s8, 0
    %p80 = por %p78, %p79
    %p81 = scmp.ne.s32.totalorder %s70, %s73
    %p82 = scmp.eq.s32.totalorder %s13, 1
    %p83 = por %p81, %p82
    %p84 = scmp.ne.s32.totalorder %s73, %s74
    %p85 = scmp.eq.s32.totalorder %s13, 0
    %p86 = por %p84, %p85
    %p87 = scmp.ne.s32.totalorder %s73, %s74
    %p88 = scmp.eq.s32.totalorder %s14, 1
    %p89 = por %p87, %p88
    %p91 = scmp.ne.s32.totalorder %s74, %s90
    %p92 = scmp.eq.s32.totalorder %s14, 0
    %p93 = por %p91, %p92
    %p94 = scmp.le.s32.totalorder 1, %s8
    %p95 = scmp.lt.s32.totalorder %s8, 3
    %p96 = pnand %p94, %p95
    %p97 = pneg %p96
    // Predicated region
    $region9: #{blur_forward.8} parent=5 // pred_check
      _
    $region10: #{blur_forward.8} parent=5 // pred_check_branch
      %99 = sbr.rel (%p96) target = $region12
    $region11: #{blur_forward.8} parent=5 // pred_region
      %s100 = ssub.s32 %s8, 1
    $region12: #{blur_forward.8} parent=5 // pred_fallthru
      _
    %p101 = scmp.lt.s32.totalorder %s8, 2
    // Predicated region
    $region13: #{blur_forward.8} parent=5 // pred_check
      %p102 = pneg %p101
    $region14: #{blur_forward.8} parent=5 // pred_check_branch
      %104 = sbr.rel (%p102) target = $region16
    $region15: #{blur_forward.8} parent=5 // pred_region
      // Predicated region
      $region17: #{blur_forward.8} parent=15 // pred_check
        %p105 = pneg %p28
      $region18: #{blur_forward.8} parent=15 // pred_check_branch
        %107 = sbr.rel (%p105) target = $region20
      $region19: #{blur_forward.8} parent=15 // pred_region
        %p108 = scmp.lt.s32.totalorder %s8, 1
        %s109 = scalar_select %p108, %s8, 1
        %s110 = smul.addr %s109, 3
        %s111 = smul.addr %s110, 4
        %s112 = scalar_lea.vmem %s0, %s111
      $region20: #{blur_forward.8} parent=15 // pred_fallthru
        _
      // Predicated region
      $region21: #{blur_forward.8} parent=15 // pred_check
        %p113 = pneg %p54
      $region22: #{blur_forward.8} parent=15 // pred_check_branch
        %115 = sbr.rel (%p113) target = $region24
      $region23: #{blur_forward.8} parent=15 // pred_region
        %p116 = scmp.lt.s32.totalorder %s8, 1
        %s117 = scalar_select %p116, %s8, 1
        %s118 = smul.addr %s117, 2
        %s119 = smul.addr %s118, 4
        %s120 = scalar_lea.vmem %s1, %s119
      $region24: #{blur_forward.8} parent=15 // pred_fallthru
        _
    $region16: #{blur_forward.8} parent=5 // pred_fallthru
      _
    %p121 = scmp.le.s32.totalorder 1, %s8
    %p122 = scmp.lt.s32.totalorder %s8, 3
    %p123 = pnand %p121, %p122
    %p124 = pneg %p123
    // Predicated region
    $region25: #{blur_forward.8} parent=5 // pred_check
      _
    $region26: #{blur_forward.8} parent=5 // pred_check_branch
      %126 = sbr.rel (%p123) target = $region28
    $region27: #{blur_forward.8} parent=5 // pred_region
      %s127 = ssub.s32 %s8, 1
      %p128 = scmp.lt.s32.totalorder %s13, 1
      %s129 = scalar_select %p128, %s13, 1
      %s130 = smul.addr %s129, 3
      %s131 = smul.addr %s130, 4
      %s132 = scalar_lea.vmem %s0, %s131
      %p133 = pneg %p34
      %p134 = pneg %p31
      %p135 = scmp.lt.s32.totalorder %s13, 1
      %s136 = scalar_select %p135, %s13, 1
      %s137 = smul.addr %s136, 2
      %s138 = smul.addr %s137, 4
      %s139 = scalar_lea.vmem %s1, %s138
      %p140 = pneg %p60
      %p141 = pneg %p57
      %p142 = pneg %p86
      %p143 = pneg %p83
      %p144 = scmp.lt.s32.totalorder %s13, 1
      %s145 = scalar_select %p144, %s13, 1
      %s146 = smul.addr %s145, 4
      %s147 = scalar_lea.vmem %s2, %s146
      %p148 = scmp.lt.s32.totalorder %s13, 1
      %s149 = scalar_select %p148, %s13, 1
      %s150 = smul.addr %s149, 3
      %s151 = smul.addr %s150, 4
      %s152 = scalar_lea.vmem %s0, %s151
      %p153 = scmp.lt.s32.totalorder %s13, 1
      %s154 = scalar_select %p153, %s13, 1
      %s155 = smul.addr %s154, 2
      %s156 = smul.addr %s155, 4
      %s157 = scalar_lea.vmem %s1, %s156
      %p158 = scmp.lt.s32.totalorder %s13, 1
      %s159 = scalar_select %p158, %s13, 1
      %s160 = smul.addr %s159, 4
      %s161 = scalar_lea.vmem %s2, %s160
      %v163 = vld [vmem:[%s152] sm:$0xff]
      %v164 = vld [vmem:[%s152 + $0x8] sm:$0xf]
      %v165 = vld [vmem:[%s157] sm:$0xff]
      %166 = vmatprep.subr.bf16.mxu0 0
      %167 = vmatpush1.bf16.xpose.msra.mxu0 0
      %168 = vmatprep.subr.bf16.mxu0 0
      %169 = vmatpush1.bf16.xpose.msra.mxu0 0
      %170 = vmatprep.subr.bf16.mxu0 0
      %171 = vmatpush1.bf16.xpose.msra.mxu0 0
      %172 = vmatprep.subr.bf16.mxu0 0
      %173 = vmatpush1.bf16.xpose.msra.mxu0 0
      %174 = vmatprep.subr.bf16.mxu0 0
      %175 = vmatpush1.bf16.xpose.msra.mxu0 0
      %176 = vmatprep.subr.bf16.mxu0 0
      %177 = vmatpush1.bf16.xpose.msra.mxu0 0
      %178 = vmatprep.subr.bf16.mxu0 0
      %179 = vmatpush1.bf16.xpose.msra.mxu0 0
      %180 = vmatprep.subr.bf16.mxu0 0
      %181 = vmatpush1.bf16.xpose.msra.mxu0 %v165
      %182 = vmatprep.subr.bf16.mxu0 0
      %183 = vmatpush2.bf16.xpose.msra.mxu0 0
      %184 = vmatprep.subr.bf16.mxu0 0
      %185 = vmatpush2.bf16.xpose.msra.mxu0 0
      %186 = vmatprep.subr.bf16.mxu0 0
      %187 = vmatpush2.bf16.xpose.msra.mxu0 0
      %188 = vmatprep.subr.bf16.mxu0 0
      %189 = vmatpush2.bf16.xpose.msra.mxu0 0
      %190 = vmatprep.subr.bf16.mxu0 0
      %191 = vmatpush2.bf16.xpose.msra.mxu0 0
      %192 = vmatprep.subr.bf16.mxu0 0
      %193 = vmatpush2.bf16.xpose.msra.mxu0 0
      %194 = vmatprep.subr.bf16.mxu0 0
      %195 = vmatpush2.bf16.xpose.msra.mxu0 0
      %196 = vmatprep.subr.bf16.mxu0 0
      %197 = vmatpush2.bf16.xpose.msra.mxu0 0
      %198 = vmatprep.mubr.bf16.mxu0 0
      %199 = vmatmul.mubr.bf16.gmra.mxu0 %v163
      %v200 = vpop.f32.mrf.mxu0
      %v201 = vadd.f32 0.0, %v200
      %v202 = vpop.f32.mrf.mxu0
      %v203 = vpop.f32.mrf.mxu0
      %v204 = vpop.f32.mrf.mxu0
      %205 = vdwg.mxu0
      %v206 = vmul.f32 %v201, 0.088388346
      %v208 = vunpack.c.h.b16 %v163
      %v209 = vpack.c.b16 %v208, %v208
      %211 = vmatprep.subr.bf16.mxu0 0
      %212 = vmatpush1.bf16.xpose.msra.mxu0 0
      %213 = vmatprep.subr.bf16.mxu0 0
      %214 = vmatpush1.bf16.xpose.msra.mxu0 0
      %215 = vmatprep.subr.bf16.mxu0 0
      %216 = vmatpush1.bf16.xpose.msra.mxu0 0
      %217 = vmatprep.subr.bf16.mxu0 0
      %218 = vmatpush1.bf16.xpose.msra.mxu0 0
      %219 = vmatprep.subr.bf16.mxu0 0
      %220 = vmatpush1.bf16.xpose.msra.mxu0 0
      %221 = vmatprep.subr.bf16.mxu0 0
      %222 = vmatpush1.bf16.xpose.msra.mxu0 0
      %223 = vmatprep.subr.bf16.mxu0 0
      %224 = vmatpush1.bf16.xpose.msra.mxu0 0
      %225 = vmatprep.subr.bf16.mxu0 0
      %226 = vmatpush1.bf16.xpose.msra.mxu0 %v209
      %227 = vmatprep.subr.bf16.mxu0 0
      %228 = vmatpush2.bf16.xpose.msra.mxu0 0
      %229 = vmatprep.subr.bf16.mxu0 0
      %230 = vmatpush2.bf16.xpose.msra.mxu0 0
      %231 = vmatprep.subr.bf16.mxu0 0
      %232 = vmatpush2.bf16.xpose.msra.mxu0 0
      %233 = vmatprep.subr.bf16.mxu0 0
      %234 = vmatpush2.bf16.xpose.msra.mxu0 0
      %235 = vmatprep.subr.bf16.mxu0 0
      %236 = vmatpush2.bf16.xpose.msra.mxu0 0
      %237 = vmatprep.subr.bf16.mxu0 0
      %238 = vmatpush2.bf16.xpose.msra.mxu0 0
      %239 = vmatprep.subr.bf16.mxu0 0
      %240 = vmatpush2.bf16.xpose.msra.mxu0 0
      %241 = vmatprep.subr.bf16.mxu0 0
      %242 = vmatpush2.bf16.xpose.msra.mxu0 0
      %243 = vmatprep.mubr.bf16.mxu0 0
      %244 = vmatmul.mubr.bf16.gmra.mxu0 %v163
      %v245 = vpop.f32.mrf.mxu0
      %v246 = vadd.f32 0.0, %v245
      %v247 = vpop.f32.mrf.mxu0
      %v248 = vpop.f32.mrf.mxu0
      %v249 = vpop.f32.mrf.mxu0
      %250 = vdwg.mxu0
      %v251 = vmul.f32 %v246, 0.088388346
      %v252 = vlaneseq
      %v253 = vshrl.u32 %v252, 7
      %v254 = vlaneseq
      %v255 = vand.u32 %v254, 127
      %vm256 = vcmp.le.s32.totalorder %v255, %v253
      %v257 = vsel %vm256, %v251, -1e+30
      %vm258 = vcmask 64512
      %v259 = vsel %vm258, %v206, -inf
      %260 = vmax.xlane.f32.xlu0 %v259
      %v261 = vpop.xlane.xlu0 %260
      %v262 = vsel %vm258, %v257, -inf
      %263 = vmax.xlane.f32.xlu0 %v262
      %v264 = vpop.xlane.xlu0 %263
      %v265 = vmax.f32 %v261, %v264
      %v266 = vsub.f32 %v206, %v265
      %v267 = vmul.f32 %v266, 1.442695
      %v268 = vpow.pop %v267
      %v269 = vsub.f32 %v257, %v265
      %v270 = vmul.f32 %v269, 1.442695
      %v271 = vpow.pop %v270
      %v272 = vsel %vm258, %v268, 0.0
      %273 = vadd.xlane.f32.xlu0 %v272
      %v274 = vpop.xlane.xlu0 %273
      %v275 = vsel %vm258, %v271, 0.0
      %276 = vadd.xlane.f32.xlu0 %v275
      %v277 = vpop.xlane.xlu0 %276
      %v278 = vadd.f32 %v274, %v277
      %v279 = vpack.c.bf16 %v268, %v268
      %v280 = vpack.c.bf16 %v271, %v271
      %v282 = vsel %vm258, %v280, 0
      %vm284 = vcmask 1043456
      %v286 = vsel %vm284, %v164, 0
      %288 = vmatprep.subr.bf16.mxu0 0
      %289 = vmatpush1.bf16.msra.mxu0 0
      %290 = vmatprep.subr.bf16.mxu0 0
      %291 = vmatpush1.bf16.msra.mxu0 0
      %292 = vmatprep.subr.bf16.mxu0 0
      %293 = vmatpush1.bf16.msra.mxu0 0
      %294 = vmatprep.subr.bf16.mxu0 0
      %295 = vmatpush1.bf16.msra.mxu0 0
      %296 = vmatprep.subr.bf16.mxu0 0
      %297 = vmatpush1.bf16.msra.mxu0 0
      %298 = vmatprep.subr.bf16.mxu0 0
      %299 = vmatpush1.bf16.msra.mxu0 0
      %300 = vmatprep.subr.bf16.mxu0 0
      %301 = vmatpush1.bf16.msra.mxu0 0
      %302 = vmatprep.subr.bf16.mxu0 0
      %303 = vmatpush1.bf16.msra.mxu0 %v286
      %304 = vmatprep.subr.bf16.mxu0 0
      %305 = vmatpush2.bf16.msra.mxu0 0
      %306 = vmatprep.subr.bf16.mxu0 0
      %307 = vmatpush2.bf16.msra.mxu0 0
      %308 = vmatprep.subr.bf16.mxu0 0
      %309 = vmatpush2.bf16.msra.mxu0 0
      %310 = vmatprep.subr.bf16.mxu0 0
      %311 = vmatpush2.bf16.msra.mxu0 0
      %312 = vmatprep.subr.bf16.mxu0 0
      %313 = vmatpush2.bf16.msra.mxu0 0
      %314 = vmatprep.subr.bf16.mxu0 0
      %315 = vmatpush2.bf16.msra.mxu0 0
      %316 = vmatprep.subr.bf16.mxu0 0
      %317 = vmatpush2.bf16.msra.mxu0 0
      %318 = vmatprep.subr.bf16.mxu0 0
      %319 = vmatpush2.bf16.msra.mxu0 0
      %320 = vmatprep.mubr.bf16.mxu0 0
      %321 = vmatmul.mubr.bf16.gmra.mxu0 %v282
      %v322 = vpop.f32.mrf.mxu0
      %v323 = vadd.f32 0.0, %v322
      %v324 = vpop.f32.mrf.mxu0
      %v325 = vpop.f32.mrf.mxu0
      %v326 = vpop.f32.mrf.mxu0
      %327 = vdwg.mxu0
      %v329 = vunpack.c.h.b16 %v165
      %v330 = vpack.c.b16 %v329, %v329
      %v332 = vsel %vm258, %v279, 0
      %v335 = vsel %vm284, %v330, 0
      %337 = vmatprep.subr.bf16.mxu0 0
      %338 = vmatpush1.bf16.msra.mxu0 0
      %339 = vmatprep.subr.bf16.mxu0 0
      %340 = vmatpush1.bf16.msra.mxu0 0
      %341 = vmatprep.subr.bf16.mxu0 0
      %342 = vmatpush1.bf16.msra.mxu0 0
      %343 = vmatprep.subr.bf16.mxu0 0
      %344 = vmatpush1.bf16.msra.mxu0 0
      %345 = vmatprep.subr.bf16.mxu0 0
      %346 = vmatpush1.bf16.msra.mxu0 0
      %347 = vmatprep.subr.bf16.mxu0 0
      %348 = vmatpush1.bf16.msra.mxu0 0
      %349 = vmatprep.subr.bf16.mxu0 0
      %350 = vmatpush1.bf16.msra.mxu0 0
      %351 = vmatprep.subr.bf16.mxu0 0
      %352 = vmatpush1.bf16.msra.mxu0 %v335
      %353 = vmatprep.subr.bf16.mxu0 0
      %354 = vmatpush2.bf16.msra.mxu0 0
      %355 = vmatprep.subr.bf16.mxu0 0
      %356 = vmatpush2.bf16.msra.mxu0 0
      %357 = vmatprep.subr.bf16.mxu0 0
      %358 = vmatpush2.bf16.msra.mxu0 0
      %359 = vmatprep.subr.bf16.mxu0 0
      %360 = vmatpush2.bf16.msra.mxu0 0
      %361 = vmatprep.subr.bf16.mxu0 0
      %362 = vmatpush2.bf16.msra.mxu0 0
      %363 = vmatprep.subr.bf16.mxu0 0
      %364 = vmatpush2.bf16.msra.mxu0 0
      %365 = vmatprep.subr.bf16.mxu0 0
      %366 = vmatpush2.bf16.msra.mxu0 0
      %367 = vmatprep.subr.bf16.mxu0 0
      %368 = vmatpush2.bf16.msra.mxu0 0
      %369 = vmatprep.mubr.bf16.mxu0 0
      %370 = vmatmul.mubr.bf16.gmra.mxu0 %v332
      %v371 = vpop.f32.mrf.mxu0
      %v372 = vadd.f32 %v323, %v371
      %v373 = vpop.f32.mrf.mxu0
      %v374 = vpop.f32.mrf.mxu0
      %v375 = vpop.f32.mrf.mxu0
      %376 = vdwg.mxu0
      %v377 = vrcp.pop %v278
      %v378 = vmul.f32 %v372, %v377
      %v379 = vpack.c.bf16 %v378, %v378
      %380 = vst [vmem:[%s161] sm:$0xf] %v379
      %p381 = scmp.lt.s32.totalorder %s13, 1
      %s382 = scalar_select %p381, %s13, 1
      %s383 = smul.addr %s382, 4
      %s384 = scalar_lea.vmem %s2, %s383
      // Predicated region
      $region29: #{blur_forward.8} parent=27 // pred_check
        %p385 = pneg %p83
      $region30: #{blur_forward.8} parent=27 // pred_check_branch
        %387 = sbr.rel (%p385) target = $region32
      $region31: #{blur_forward.8} parent=27 // pred_region
        _
      $region32: #{blur_forward.8} parent=27 // pred_fallthru
        _
    $region28: #{blur_forward.8} parent=5 // pred_fallthru
      _
    %p388 = scmp.le.s32.totalorder 2, %s8
    // Predicated region
    $region33: #{blur_forward.8} parent=5 // pred_check
      %p389 = pneg %p388
    $region34: #{blur_forward.8} parent=5 // pred_check_branch
      %391 = sbr.rel (%p389) target = $region36
    $region35: #{blur_forward.8} parent=5 // pred_region
      %s392 = ssub.s32 %s8, 2
      // Predicated region
      $region37: #{blur_forward.8} parent=35 // pred_check
        %p393 = pneg %p89
      $region38: #{blur_forward.8} parent=35 // pred_check_branch
        %395 = sbr.rel (%p393) target = $region40
      $region39: #{blur_forward.8} parent=35 // pred_region
        %p396 = scmp.lt.s32.totalorder %s14, 1
        %s397 = scalar_select %p396, %s14, 1
        %s398 = smul.addr %s397, 4
        %s399 = scalar_lea.vmem %s2, %s398
      $region40: #{blur_forward.8} parent=35 // pred_fallthru
        _
    $region36: #{blur_forward.8} parent=5 // pred_fallthru
      _
  $region6: #{blur_forward.8} parent=0 // loop_footer
    %s12 = sadd.s32 1, %s8
  $region7: #{blur_forward.8} parent=0 // loop_footer_branch
    %7 = sbr.rel target = $region3
  $region8: #{blur_forward.8} parent=0 // loop_exit
    _

// kernel: squeeze.1
$region0: #{squeeze.1}
  %s0 = inlined_call_operand.vmem [shape: f32[16], index: 0, kind: input, shape index: {}]
  %s1 = inlined_call_operand.vmem [shape: f32[2,8], index: 1, kind: output, shape index: {}]
  $region1: #{squeeze.1} parent=0
    #allocation0 [shape = 'u8[4096]{0}', space=vmem, size = 0x1000, scoped, tag = 'scoped mem for output reshape']
    #allocation1 [shape = 'u8[4096]{0}', space=vmem, size = 0x1000, scoped, tag = 'scoped mem for input reshape']
    %s3 = sshll.u32 1, 1
    %s4 = ssub.s32 %s3, 1
    %v5 = vld [vmem:[%s0] sm:%s4]
    %6 = vst [vmem:[#allocation1] sm:%s4] %v5
    %v7 = vld [vmem:[#allocation1] sm:$0x1]
    %vm8 = vcmask 64512
    %9 = vst.msk [vmem:[#allocation0] sm:$0x1] %vm8, %v7
    %v10 = vld [vmem:[#allocation1] sm:$0x1]
    %11 = vrot.lane.b32.xlu0 %v10, 120
    %v12 = vpop.permute.xlu0 %11
    %vm13 = vcmask 64512
    %s14 = scalar_lea.vmem [#allocation0], 1
    %15 = vst.msk [vmem:[%s14] sm:$0x1] %vm13, %v12
    %s17 = sshll.u32 1, 2
    %s18 = ssub.s32 %s17, 1
    %v20 = vld [vmem:[#allocation0] sm:%s18]
    %s21 = sshll.u32 1, 2
    %s22 = ssub.s32 %s21, 1
    %23 = vst [vmem:[%s1] sm:%s22] %v20

// kernel: blur_forward.10
$region0: #{blur_forward.10}
  #allocation0 [shape = 'u32[]', space=smem, size = 0x4, offset = 0x4, fixed_abs, tag = 'smem constant byte address 0x4 - core index']
  #allocation1 [shape = 'u32[144,128]{1,0:T(1,128)}', space=vmem, size = 0x12000, scoped, tag = 'internal scratch']
  #allocation2 [shape = 'f32[16,128]{1,0:T(8,128)}', space=vmem, size = 0x2000, scoped, tag = 'scratch operand']
  %s0 = inlined_call_operand.vmem [shape: bf16[16,128], index: 0, kind: input, shape index: {}]
  %s1 = inlined_call_operand.vmem [shape: bf16[128,256], index: 1, kind: input, shape index: {}]
  %s2 = inlined_call_operand.vmem [shape: bf16[256,128], index: 2, kind: input, shape index: {}]
  %s3 = inlined_call_operand.vmem [shape: f32[1,128], index: 3, kind: input, shape index: {}]
  %s4 = inlined_call_operand.vmem [shape: f32[1,128], index: 4, kind: input, shape index: {}]
  %s5 = inlined_call_operand.vmem [shape: bf16[16,128], index: 5, kind: output, shape index: {}]
  %s6 = sld [smem:[#allocation0]]
  $region38: #{blur_forward.10} parent=0
    _
  %s8 = ssub.s32 1, %s6
  %s9 = scalar_select 0, %s8, %s6
  // Predicated region
  $region2: #{blur_forward.10} parent=0 // pred_check
    _
  $region3: #{blur_forward.10} parent=0 // pred_check_branch
    %11 = sbr.rel (0) target = $region5
  $region4: #{blur_forward.10} parent=0 // pred_region
    _
  $region5: #{blur_forward.10} parent=0 // pred_fallthru
    _
  // Predicated region
  $region6: #{blur_forward.10} parent=0 // pred_check
    _
  $region7: #{blur_forward.10} parent=0 // pred_check_branch
    %13 = sbr.rel (0) target = $region9
  $region8: #{blur_forward.10} parent=0 // pred_region
    _
  $region9: #{blur_forward.10} parent=0 // pred_fallthru
    _
  // Predicated region
  $region10: #{blur_forward.10} parent=0 // pred_check
    _
  $region11: #{blur_forward.10} parent=0 // pred_check_branch
    %15 = sbr.rel (0) target = $region13
  $region12: #{blur_forward.10} parent=0 // pred_region
    _
  $region13: #{blur_forward.10} parent=0 // pred_fallthru
    _
  // Predicated region
  $region14: #{blur_forward.10} parent=0 // pred_check
    _
  $region15: #{blur_forward.10} parent=0 // pred_check_branch
    %17 = sbr.rel (0) target = $region17
  $region16: #{blur_forward.10} parent=0 // pred_region
    _
  $region17: #{blur_forward.10} parent=0 // pred_fallthru
    _
  // Predicated region
  $region18: #{blur_forward.10} parent=0 // pred_check
    _
  $region19: #{blur_forward.10} parent=0 // pred_check_branch
    %19 = sbr.rel (0) target = $region21
  $region20: #{blur_forward.10} parent=0 // pred_region
    _
  $region21: #{blur_forward.10} parent=0 // pred_fallthru
    _
  %p21 = scmp.eq.s32.totalorder 0, 0
  // Predicated region
  $region22: #{blur_forward.10} parent=0 // pred_check
    %p22 = pneg %p21
  $region23: #{blur_forward.10} parent=0 // pred_check_branch
    %24 = sbr.rel (%p22) target = $region25
  $region24: #{blur_forward.10} parent=0 // pred_region
    %25 = vst [vmem:[#allocation2] sm:$0xff] 0.0
    %26 = vst [vmem:[#allocation2 + $0x8] sm:$0xff] 0.0
  $region25: #{blur_forward.10} parent=0 // pred_fallthru
    _
  %v27 = vld [vmem:[%s0] sm:$0xf]
  %v28 = vld [vmem:[%s0 + $0x4] sm:$0xf]
  %v29 = vld [vmem:[%s1] sm:$0xff]
  %v30 = vld [vmem:[%s1 + $0x8] sm:$0xff]
  %v31 = vld [vmem:[%s1 + $0x10] sm:$0xff]
  %v32 = vld [vmem:[%s1 + $0x18] sm:$0xff]
  %v33 = vld [vmem:[%s1 + $0x20] sm:$0xff]
  %v34 = vld [vmem:[%s1 + $0x28] sm:$0xff]
  %v35 = vld [vmem:[%s1 + $0x30] sm:$0xff]
  %v36 = vld [vmem:[%s1 + $0x38] sm:$0xff]
  %v37 = vld [vmem:[%s1 + $0x40] sm:$0xff]
  %v38 = vld [vmem:[%s1 + $0x48] sm:$0xff]
  %v39 = vld [vmem:[%s1 + $0x50] sm:$0xff]
  %v40 = vld [vmem:[%s1 + $0x58] sm:$0xff]
  %v41 = vld [vmem:[%s1 + $0x60] sm:$0xff]
  %v42 = vld [vmem:[%s1 + $0x68] sm:$0xff]
  %v43 = vld [vmem:[%s1 + $0x70] sm:$0xff]
  %v44 = vld [vmem:[%s1 + $0x78] sm:$0xff]
  %v47 = vunpack.c.l.b16 %v27
  %v48 = vunpack.c.l.b16 %v28
  %v49 = vpack.c.b16 %v48, %v47
  %v67 = vunpack.c.l.b16 %v29
  %v68 = vunpack.c.h.b16 %v29
  %v69 = vunpack.c.l.b16 %v30
  %v70 = vunpack.c.h.b16 %v30
  %v71 = vunpack.c.l.b16 %v31
  %v72 = vunpack.c.h.b16 %v31
  %v73 = vunpack.c.l.b16 %v32
  %v74 = vunpack.c.h.b16 %v32
  %v75 = vunpack.c.l.b16 %v33
  %v76 = vunpack.c.h.b16 %v33
  %v77 = vunpack.c.l.b16 %v34
  %v78 = vunpack.c.h.b16 %v34
  %v79 = vunpack.c.l.b16 %v35
  %v80 = vunpack.c.h.b16 %v35
  %v81 = vunpack.c.l.b16 %v36
  %v82 = vunpack.c.h.b16 %v36
  %v83 = vunpack.c.l.b16 %v37
  %v84 = vunpack.c.h.b16 %v37
  %v85 = vunpack.c.l.b16 %v38
  %v86 = vunpack.c.h.b16 %v38
  %v87 = vunpack.c.l.b16 %v39
  %v88 = vunpack.c.h.b16 %v39
  %v89 = vunpack.c.l.b16 %v40
  %v90 = vunpack.c.h.b16 %v40
  %v91 = vunpack.c.l.b16 %v41
  %v92 = vunpack.c.h.b16 %v41
  %v93 = vunpack.c.l.b16 %v42
  %v94 = vunpack.c.h.b16 %v42
  %v95 = vunpack.c.l.b16 %v43
  %v96 = vunpack.c.h.b16 %v43
  %v97 = vunpack.c.l.b16 %v44
  %v98 = vunpack.c.h.b16 %v44
  %v99 = vpack.c.b16 %v69, %v67
  %v100 = vpack.c.b16 %v70, %v68
  %v101 = vpack.c.b16 %v73, %v71
  %v102 = vpack.c.b16 %v74, %v72
  %v103 = vpack.c.b16 %v77, %v75
  %v104 = vpack.c.b16 %v78, %v76
  %v105 = vpack.c.b16 %v81, %v79
  %v106 = vpack.c.b16 %v82, %v80
  %v107 = vpack.c.b16 %v85, %v83
  %v108 = vpack.c.b16 %v86, %v84
  %v109 = vpack.c.b16 %v89, %v87
  %v110 = vpack.c.b16 %v90, %v88
  %v111 = vpack.c.b16 %v93, %v91
  %v112 = vpack.c.b16 %v94, %v92
  %v113 = vpack.c.b16 %v97, %v95
  %v114 = vpack.c.b16 %v98, %v96
  %131 = vmatprep.subr.bf16.mxu0 %v114
  %132 = vmatpush1.bf16.msra.mxu0 %v113
  %133 = vmatprep.subr.bf16.mxu0 %v112
  %134 = vmatpush1.bf16.msra.mxu0 %v111
  %135 = vmatprep.subr.bf16.mxu0 %v110
  %136 = vmatpush1.bf16.msra.mxu0 %v109
  %137 = vmatprep.subr.bf16.mxu0 %v108
  %138 = vmatpush1.bf16.msra.mxu0 %v107
  %139 = vmatprep.subr.bf16.mxu0 %v106
  %140 = vmatpush1.bf16.msra.mxu0 %v105
  %141 = vmatprep.subr.bf16.mxu0 %v104
  %142 = vmatpush1.bf16.msra.mxu0 %v103
  %143 = vmatprep.subr.bf16.mxu0 %v102
  %144 = vmatpush1.bf16.msra.mxu0 %v101
  %145 = vmatprep.subr.bf16.mxu0 %v100
  %146 = vmatpush1.bf16.msra.mxu0 %v99
  %147 = vmatprep.subr.bf16.mxu0 0
  %148 = vmatpush2.bf16.msra.mxu0 0
  %149 = vmatprep.subr.bf16.mxu0 0
  %150 = vmatpush2.bf16.msra.mxu0 0
  %151 = vmatprep.subr.bf16.mxu0 0
  %152 = vmatpush2.bf16.msra.mxu0 0
  %153 = vmatprep.subr.bf16.mxu0 0
  %154 = vmatpush2.bf16.msra.mxu0 0
  %155 = vmatprep.subr.bf16.mxu0 0
  %156 = vmatpush2.bf16.msra.mxu0 0
  %157 = vmatprep.subr.bf16.mxu0 0
  %158 = vmatpush2.bf16.msra.mxu0 0
  %159 = vmatprep.subr.bf16.mxu0 0
  %160 = vmatpush2.bf16.msra.mxu0 0
  %161 = vmatprep.subr.bf16.mxu0 0
  %162 = vmatpush2.bf16.msra.mxu0 0
  %163 = vmatprep.mubr.bf16.mxu0 0
  %164 = vmatmul.mubr.bf16.gmra.mxu0 %v49
  %v165 = vpop.f32.mrf.mxu0
  %v166 = vadd.f32 0.0, %v165
  %v167 = vpop.f32.mrf.mxu0
  %v168 = vadd.f32 0.0, %v167
  %v169 = vpop.f32.mrf.mxu0
  %v170 = vadd.f32 0.0, %v169
  %v171 = vpop.f32.mrf.mxu0
  %v172 = vadd.f32 0.0, %v171
  %173 = vdwg.mxu0
  %v174 = vmax.f32 %v166, 0.0
  %v175 = vmax.f32 %v168, 0.0
  %v176 = vmax.f32 %v170, 0.0
  %v177 = vmax.f32 %v172, 0.0
  %v178 = vld [vmem:[#allocation2] sm:$0xff]
  %v179 = vld [vmem:[#allocation2 + $0x8] sm:$0xff]
  %v180 = vpack.c.bf16 %v176, %v174
  %v181 = vpack.c.bf16 %v177, %v175
  %v182 = vld [vmem:[%s2] sm:$0xf]
  %v183 = vld [vmem:[%s2 + $0x4] sm:$0xf]
  %v184 = vld [vmem:[%s2 + $0x8] sm:$0xf]
  %v185 = vld [vmem:[%s2 + $0xc] sm:$0xf]
  %v186 = vld [vmem:[%s2 + $0x10] sm:$0xf]
  %v187 = vld [vmem:[%s2 + $0x14] sm:$0xf]
  %v188 = vld [vmem:[%s2 + $0x18] sm:$0xf]
  %v189 = vld [vmem:[%s2 + $0x1c] sm:$0xf]
  %v190 = vld [vmem:[%s2 + $0x20] sm:$0xf]
  %v191 = vld [vmem:[%s2 + $0x24] sm:$0xf]
  %v192 = vld [vmem:[%s2 + $0x28] sm:$0xf]
  %v193 = vld [vmem:[%s2 + $0x2c] sm:$0xf]
  %v194 = vld [vmem:[%s2 + $0x30] sm:$0xf]
  %v195 = vld [vmem:[%s2 + $0x34] sm:$0xf]
  %v196 = vld [vmem:[%s2 + $0x38] sm:$0xf]
  %v197 = vld [vmem:[%s2 + $0x3c] sm:$0xf]
  %v198 = vld [vmem:[%s2 + $0x40] sm:$0xf]
  %v199 = vld [vmem:[%s2 + $0x44] sm:$0xf]
  %v200 = vld [vmem:[%s2 + $0x48] sm:$0xf]
  %v201 = vld [vmem:[%s2 + $0x4c] sm:$0xf]
  %v202 = vld [vmem:[%s2 + $0x50] sm:$0xf]
  %v203 = vld [vmem:[%s2 + $0x54] sm:$0xf]
  %v204 = vld [vmem:[%s2 + $0x58] sm:$0xf]
  %v205 = vld [vmem:[%s2 + $0x5c] sm:$0xf]
  %v206 = vld [vmem:[%s2 + $0x60] sm:$0xf]
  %v207 = vld [vmem:[%s2 + $0x64] sm:$0xf]
  %v208 = vld [vmem:[%s2 + $0x68] sm:$0xf]
  %v209 = vld [vmem:[%s2 + $0x6c] sm:$0xf]
  %v210 = vld [vmem:[%s2 + $0x70] sm:$0xf]
  %v211 = vld [vmem:[%s2 + $0x74] sm:$0xf]
  %v212 = vld [vmem:[%s2 + $0x78] sm:$0xf]
  %v213 = vld [vmem:[%s2 + $0x7c] sm:$0xf]
  %v246 = vunpack.c.l.b16 %v182
  %v247 = vunpack.c.l.b16 %v183
  %v248 = vunpack.c.l.b16 %v184
  %v249 = vunpack.c.l.b16 %v185
  %v250 = vunpack.c.l.b16 %v186
  %v251 = vunpack.c.l.b16 %v187
  %v252 = vunpack.c.l.b16 %v188
  %v253 = vunpack.c.l.b16 %v189
  %v254 = vunpack.c.l.b16 %v190
  %v255 = vunpack.c.l.b16 %v191
  %v256 = vunpack.c.l.b16 %v192
  %v257 = vunpack.c.l.b16 %v193
  %v258 = vunpack.c.l.b16 %v194
  %v259 = vunpack.c.l.b16 %v195
  %v260 = vunpack.c.l.b16 %v196
  %v261 = vunpack.c.l.b16 %v197
  %v262 = vunpack.c.l.b16 %v198
  %v263 = vunpack.c.l.b16 %v199
  %v264 = vunpack.c.l.b16 %v200
  %v265 = vunpack.c.l.b16 %v201
  %v266 = vunpack.c.l.b16 %v202
  %v267 = vunpack.c.l.b16 %v203
  %v268 = vunpack.c.l.b16 %v204
  %v269 = vunpack.c.l.b16 %v205
  %v270 = vunpack.c.l.b16 %v206
  %v271 = vunpack.c.l.b16 %v207
  %v272 = vunpack.c.l.b16 %v208
  %v273 = vunpack.c.l.b16 %v209
  %v274 = vunpack.c.l.b16 %v210
  %v275 = vunpack.c.l.b16 %v211
  %v276 = vunpack.c.l.b16 %v212
  %v277 = vunpack.c.l.b16 %v213
  %v278 = vpack.c.b16 %v247, %v246
  %v279 = vpack.c.b16 %v249, %v248
  %v280 = vpack.c.b16 %v251, %v250
  %v281 = vpack.c.b16 %v253, %v252
  %v282 = vpack.c.b16 %v255, %v254
  %v283 = vpack.c.b16 %v257, %v256
  %v284 = vpack.c.b16 %v259, %v258
  %v285 = vpack.c.b16 %v261, %v260
  %v286 = vpack.c.b16 %v263, %v262
  %v287 = vpack.c.b16 %v265, %v264
  %v288 = vpack.c.b16 %v267, %v266
  %v289 = vpack.c.b16 %v269, %v268
  %v290 = vpack.c.b16 %v271, %v270
  %v291 = vpack.c.b16 %v273, %v272
  %v292 = vpack.c.b16 %v275, %v274
  %v293 = vpack.c.b16 %v277, %v276
  %310 = vmatprep.subr.bf16.mxu0 0
  %311 = vmatpush1.bf16.msra.mxu0 %v285
  %312 = vmatprep.subr.bf16.mxu0 0
  %313 = vmatpush1.bf16.msra.mxu0 %v284
  %314 = vmatprep.subr.bf16.mxu0 0
  %315 = vmatpush1.bf16.msra.mxu0 %v283
  %316 = vmatprep.subr.bf16.mxu0 0
  %317 = vmatpush1.bf16.msra.mxu0 %v282
  %318 = vmatprep.subr.bf16.mxu0 0
  %319 = vmatpush1.bf16.msra.mxu0 %v281
  %320 = vmatprep.subr.bf16.mxu0 0
  %321 = vmatpush1.bf16.msra.mxu0 %v280
  %322 = vmatprep.subr.bf16.mxu0 0
  %323 = vmatpush1.bf16.msra.mxu0 %v279
  %324 = vmatprep.subr.bf16.mxu0 0
  %325 = vmatpush1.bf16.msra.mxu0 %v278
  %326 = vmatprep.subr.bf16.mxu0 0
  %327 = vmatpush2.bf16.msra.mxu0 %v293
  %328 = vmatprep.subr.bf16.mxu0 0
  %329 = vmatpush2.bf16.msra.mxu0 %v292
  %330 = vmatprep.subr.bf16.mxu0 0
  %331 = vmatpush2.bf16.msra.mxu0 %v291
  %332 = vmatprep.subr.bf16.mxu0 0
  %333 = vmatpush2.bf16.msra.mxu0 %v290
  %334 = vmatprep.subr.bf16.mxu0 0
  %335 = vmatpush2.bf16.msra.mxu0 %v289
  %336 = vmatprep.subr.bf16.mxu0 0
  %337 = vmatpush2.bf16.msra.mxu0 %v288
  %338 = vmatprep.subr.bf16.mxu0 0
  %339 = vmatpush2.bf16.msra.mxu0 %v287
  %340 = vmatprep.subr.bf16.mxu0 0
  %341 = vmatpush2.bf16.msra.mxu0 %v286
  %342 = vmatprep.mubr.bf16.mxu0 %v181
  %343 = vmatmul.mubr.bf16.gmra.mxu0 %v180
  %v344 = vpop.f32.mrf.mxu0
  %v345 = vadd.f32 0.0, %v344
  %v346 = vpop.f32.mrf.mxu0
  %v347 = vpop.f32.mrf.mxu0
  %v348 = vadd.f32 0.0, %v347
  %v349 = vpop.f32.mrf.mxu0
  %350 = vdwg.mxu0
  %v351 = vadd.f32 %v178, %v345
  %v352 = vadd.f32 %v179, %v348
  %353 = vst [vmem:[#allocation2] sm:$0xff] %v351
  %354 = vst [vmem:[#allocation2 + $0x8] sm:$0xff] %v352
  // Predicated region
  $region26: #{blur_forward.10} parent=0 // pred_check
    %p355 = pneg %p21
  $region27: #{blur_forward.10} parent=0 // pred_check_branch
    %357 = sbr.rel (%p355) target = $region29
  $region28: #{blur_forward.10} parent=0 // pred_region
    %v358 = vld [vmem:[%s0] sm:$0xf]
    %v359 = vld [vmem:[%s0 + $0x4] sm:$0xf]
    %v360 = vunpack.c.l.bf16 %v358
    %v361 = vunpack.c.l.bf16 %v359
    %v362 = vld [vmem:[#allocation2] sm:$0xff]
    %v363 = vld [vmem:[#allocation2 + $0x8] sm:$0xff]
    %v364 = vadd.f32 %v360, %v362
    %v365 = vadd.f32 %v361, %v363
    %366 = vadd.xlane.f32.xlu0 %v364
    %v367 = vpop.xlane.xlu0 %366
    %368 = vadd.xlane.f32.xlu0 %v365
    %v369 = vpop.xlane.xlu0 %368
    %v370 = vrcp.pop 128.0
    %v371 = vmul.f32 %v367, %v370
    %v372 = vmul.f32 %v369, %v370
    %v373 = vsub.f32 %v364, %v371
    %v374 = vsub.f32 %v365, %v372
    %v375 = vmul.f32 %v373, %v373
    %v376 = vmul.f32 %v374, %v374
    %377 = vadd.xlane.f32.xlu0 %v375
    %v378 = vpop.xlane.xlu0 %377
    %379 = vadd.xlane.f32.xlu0 %v376
    %v380 = vpop.xlane.xlu0 %379
    %v381 = vmul.f32 %v378, %v370
    %v382 = vmul.f32 %v380, %v370
    %v383 = vadd.f32 %v381, 1e-05
    %v384 = vadd.f32 %v382, 1e-05
    %v385 = vrsqrt.pop %v383
    %v386 = vrsqrt.pop %v384
    %v387 = vmul.f32 %v373, %v385
    %v388 = vmul.f32 %v374, %v386
    %v389 = vld [vmem:[%s3] sm:$0x1]
    %v391 = vlaneseq
    %v392 = vshrl.u32 %v391, 7
    %v393 = vsub.s32 0, %v392
    %v394 = vrot.slane %v389, %v393
    %v396 = vmul.f32 %v387, %v394
    %v397 = vmul.f32 %v388, %v394
    %v398 = vld [vmem:[%s4] sm:$0x1]
    %v400 = vlaneseq
    %v401 = vshrl.u32 %v400, 7
    %v402 = vsub.s32 0, %v401
    %v403 = vrot.slane %v398, %v402
    %v405 = vadd.f32 %v396, %v403
    %v406 = vadd.f32 %v397, %v403
    %v407 = vpack.c.bf16 %v406, %v405
    %v409 = vunpack.c.l.b16 %v407
    %v410 = vunpack.c.h.b16 %v407
    %v411 = vpack.c.b16 %v409, %v409
    %v412 = vpack.c.b16 %v410, %v410
    %415 = vst [vmem:[%s5] sm:$0xf] %v411
    %416 = vst [vmem:[%s5 + $0x4] sm:$0xf] %v412
  $region29: #{blur_forward.10} parent=0 // pred_fallthru
    _
  // Predicated region
  $region30: #{blur_forward.10} parent=0 // pred_check
    _
  $region31: #{blur_forward.10} parent=0 // pred_check_branch
    %418 = sbr.rel (0) target = $region33
  $region32: #{blur_forward.10} parent=0 // pred_region
    _
  $region33: #{blur_forward.10} parent=0 // pred_fallthru
    _
  // Predicated region
  $region34: #{blur_forward.10} parent=0 // pred_check
    _
  $region35: #{blur_forward.10} parent=0 // pred_check_branch
    %420 = sbr.rel (0) target = $region37
  $region36: #{blur_forward.10} parent=0 // pred_region
    _
  $region37: #{blur_forward.10} parent=0 // pred_fallthru
    _

// kernel: blur_forward.11
$region0: #{blur_forward.11}
  #allocation0 [shape = 'u32[]', space=smem, size = 0x4, offset = 0x4, fixed_abs, tag = 'smem constant byte address 0x4 - core index']
  #allocation1 [shape = 'u32[144,128]{1,0:T(1,128)}', space=vmem, size = 0x12000, scoped, tag = 'internal scratch']
  #allocation2 [shape = 'f32[16,1]{1,0:T(8,128)}', space=vmem, size = 0x2000, scoped, tag = 'scratch operand']
  #allocation3 [shape = 'f32[16,1]{1,0:T(8,128)}', space=vmem, size = 0x2000, scoped, tag = 'scratch operand']
  #allocation4 [shape = 'f32[16,1]{1,0:T(8,128)}', space=vmem, size = 0x2000, scoped, tag = 'scratch operand']
  %s0 = inlined_call_operand.vmem [shape: s32[16,1], index: 0, kind: input, shape index: {}]
  %s1 = inlined_call_operand.vmem [shape: bf16[16,128], index: 1, kind: input, shape index: {}]
  %s2 = inlined_call_operand.vmem [shape: bf16[512,128], index: 2, kind: input, shape index: {}]
  %s3 = inlined_call_operand.vmem [shape: f32[16,1], index: 3, kind: output, shape index: {}]
  %s4 = sld [smem:[#allocation0]]
  $region30: #{blur_forward.11} parent=0
    _
  %s6 = ssub.s32 1, %s4
  %s7 = scalar_select 0, %s6, %s4
  // Predicated region
  $region2: #{blur_forward.11} parent=0 // pred_check
    _
  $region3: #{blur_forward.11} parent=0 // pred_check_branch
    %9 = sbr.rel (0) target = $region5
  $region4: #{blur_forward.11} parent=0 // pred_region
    _
  $region5: #{blur_forward.11} parent=0 // pred_fallthru
    _
  // Predicated region
  $region6: #{blur_forward.11} parent=0 // pred_check
    _
  $region7: #{blur_forward.11} parent=0 // pred_check_branch
    %11 = sbr.rel (0) target = $region9
  $region8: #{blur_forward.11} parent=0 // pred_region
    _
  $region9: #{blur_forward.11} parent=0 // pred_fallthru
    _
  // Predicated region
  $region10: #{blur_forward.11} parent=0 // pred_check
    _
  $region11: #{blur_forward.11} parent=0 // pred_check_branch
    %13 = sbr.rel (0) target = $region13
  $region12: #{blur_forward.11} parent=0 // pred_region
    _
  $region13: #{blur_forward.11} parent=0 // pred_fallthru
    _
  %p15 = scmp.eq.s32.totalorder 0, 0
  // Predicated region
  $region14: #{blur_forward.11} parent=0 // pred_check
    %p16 = pneg %p15
  $region15: #{blur_forward.11} parent=0 // pred_check_branch
    %18 = sbr.rel (%p16) target = $region17
  $region16: #{blur_forward.11} parent=0 // pred_region
    %vm19 = vcmask 7168
    %20 = vst.msk [vmem:[#allocation2] sm:$0xff] %vm19, -1e+30
    %21 = vst.msk [vmem:[#allocation2 + $0x8] sm:$0xff] %vm19, -1e+30
    %22 = vst.msk [vmem:[#allocation3] sm:$0xff] %vm19, 0.0
    %23 = vst.msk [vmem:[#allocation3 + $0x8] sm:$0xff] %vm19, 0.0
    %24 = vst.msk [vmem:[#allocation4] sm:$0xff] %vm19, 0.0
    %25 = vst.msk [vmem:[#allocation4 + $0x8] sm:$0xff] %vm19, 0.0
  $region17: #{blur_forward.11} parent=0 // pred_fallthru
    _
  %v26 = vld [vmem:[%s1] sm:$0xf]
  %v27 = vld [vmem:[%s1 + $0x4] sm:$0xf]
  %v28 = vld [vmem:[%s2] sm:$0xf]
  %v29 = vld [vmem:[%s2 + $0x4] sm:$0xf]
  %v30 = vld [vmem:[%s2 + $0x8] sm:$0xf]
  %v31 = vld [vmem:[%s2 + $0xc] sm:$0xf]
  %v32 = vld [vmem:[%s2 + $0x10] sm:$0xf]
  %v33 = vld [vmem:[%s2 + $0x14] sm:$0xf]
  %v34 = vld [vmem:[%s2 + $0x18] sm:$0xf]
  %v35 = vld [vmem:[%s2 + $0x1c] sm:$0xf]
  %v36 = vld [vmem:[%s2 + $0x20] sm:$0xf]
  %v37 = vld [vmem:[%s2 + $0x24] sm:$0xf]
  %v38 = vld [vmem:[%s2 + $0x28] sm:$0xf]
  %v39 = vld [vmem:[%s2 + $0x2c] sm:$0xf]
  %v40 = vld [vmem:[%s2 + $0x30] sm:$0xf]
  %v41 = vld [vmem:[%s2 + $0x34] sm:$0xf]
  %v42 = vld [vmem:[%s2 + $0x38] sm:$0xf]
  %v43 = vld [vmem:[%s2 + $0x3c] sm:$0xf]
  %v44 = vld [vmem:[%s2 + $0x40] sm:$0xf]
  %v45 = vld [vmem:[%s2 + $0x44] sm:$0xf]
  %v46 = vld [vmem:[%s2 + $0x48] sm:$0xf]
  %v47 = vld [vmem:[%s2 + $0x4c] sm:$0xf]
  %v48 = vld [vmem:[%s2 + $0x50] sm:$0xf]
  %v49 = vld [vmem:[%s2 + $0x54] sm:$0xf]
  %v50 = vld [vmem:[%s2 + $0x58] sm:$0xf]
  %v51 = vld [vmem:[%s2 + $0x5c] sm:$0xf]
  %v52 = vld [vmem:[%s2 + $0x60] sm:$0xf]
  %v53 = vld [vmem:[%s2 + $0x64] sm:$0xf]
  %v54 = vld [vmem:[%s2 + $0x68] sm:$0xf]
  %v55 = vld [vmem:[%s2 + $0x6c] sm:$0xf]
  %v56 = vld [vmem:[%s2 + $0x70] sm:$0xf]
  %v57 = vld [vmem:[%s2 + $0x74] sm:$0xf]
  %v58 = vld [vmem:[%s2 + $0x78] sm:$0xf]
  %v59 = vld [vmem:[%s2 + $0x7c] sm:$0xf]
  %v60 = vld [vmem:[%s2 + $0x80] sm:$0xf]
  %v61 = vld [vmem:[%s2 + $0x84] sm:$0xf]
  %v62 = vld [vmem:[%s2 + $0x88] sm:$0xf]
  %v63 = vld [vmem:[%s2 + $0x8c] sm:$0xf]
  %v64 = vld [vmem:[%s2 + $0x90] sm:$0xf]
  %v65 = vld [vmem:[%s2 + $0x94] sm:$0xf]
  %v66 = vld [vmem:[%s2 + $0x98] sm:$0xf]
  %v67 = vld [vmem:[%s2 + $0x9c] sm:$0xf]
  %v68 = vld [vmem:[%s2 + $0xa0] sm:$0xf]
  %v69 = vld [vmem:[%s2 + $0xa4] sm:$0xf]
  %v70 = vld [vmem:[%s2 + $0xa8] sm:$0xf]
  %v71 = vld [vmem:[%s2 + $0xac] sm:$0xf]
  %v72 = vld [vmem:[%s2 + $0xb0] sm:$0xf]
  %v73 = vld [vmem:[%s2 + $0xb4] sm:$0xf]
  %v74 = vld [vmem:[%s2 + $0xb8] sm:$0xf]
  %v75 = vld [vmem:[%s2 + $0xbc] sm:$0xf]
  %v76 = vld [vmem:[%s2 + $0xc0] sm:$0xf]
  %v77 = vld [vmem:[%s2 + $0xc4] sm:$0xf]
  %v78 = vld [vmem:[%s2 + $0xc8] sm:$0xf]
  %v79 = vld [vmem:[%s2 + $0xcc] sm:$0xf]
  %v80 = vld [vmem:[%s2 + $0xd0] sm:$0xf]
  %v81 = vld [vmem:[%s2 + $0xd4] sm:$0xf]
  %v82 = vld [vmem:[%s2 + $0xd8] sm:$0xf]
  %v83 = vld [vmem:[%s2 + $0xdc] sm:$0xf]
  %v84 = vld [vmem:[%s2 + $0xe0] sm:$0xf]
  %v85 = vld [vmem:[%s2 + $0xe4] sm:$0xf]
  %v86 = vld [vmem:[%s2 + $0xe8] sm:$0xf]
  %v87 = vld [vmem:[%s2 + $0xec] sm:$0xf]
  %v88 = vld [vmem:[%s2 + $0xf0] sm:$0xf]
  %v89 = vld [vmem:[%s2 + $0xf4] sm:$0xf]
  %v90 = vld [vmem:[%s2 + $0xf8] sm:$0xf]
  %v91 = vld [vmem:[%s2 + $0xfc] sm:$0xf]
  %v94 = vunpack.c.l.b16 %v26
  %v95 = vunpack.c.l.b16 %v27
  %v96 = vpack.c.b16 %v95, %v94
  %v162 = vunpack.c.l.b16 %v28
  %v163 = vunpack.c.l.b16 %v29
  %v164 = vunpack.c.l.b16 %v30
  %v165 = vunpack.c.l.b16 %v31
  %v166 = vunpack.c.l.b16 %v32
  %v167 = vunpack.c.l.b16 %v33
  %v168 = vunpack.c.l.b16 %v34
  %v169 = vunpack.c.l.b16 %v35
  %v170 = vunpack.c.l.b16 %v36
  %v171 = vunpack.c.l.b16 %v37
  %v172 = vunpack.c.l.b16 %v38
  %v173 = vunpack.c.l.b16 %v39
  %v174 = vunpack.c.l.b16 %v40
  %v175 = vunpack.c.l.b16 %v41
  %v176 = vunpack.c.l.b16 %v42
  %v177 = vunpack.c.l.b16 %v43
  %v178 = vunpack.c.l.b16 %v44
  %v179 = vunpack.c.l.b16 %v45
  %v180 = vunpack.c.l.b16 %v46
  %v181 = vunpack.c.l.b16 %v47
  %v182 = vunpack.c.l.b16 %v48
  %v183 = vunpack.c.l.b16 %v49
  %v184 = vunpack.c.l.b16 %v50
  %v185 = vunpack.c.l.b16 %v51
  %v186 = vunpack.c.l.b16 %v52
  %v187 = vunpack.c.l.b16 %v53
  %v188 = vunpack.c.l.b16 %v54
  %v189 = vunpack.c.l.b16 %v55
  %v190 = vunpack.c.l.b16 %v56
  %v191 = vunpack.c.l.b16 %v57
  %v192 = vunpack.c.l.b16 %v58
  %v193 = vunpack.c.l.b16 %v59
  %v194 = vunpack.c.l.b16 %v60
  %v195 = vunpack.c.l.b16 %v61
  %v196 = vunpack.c.l.b16 %v62
  %v197 = vunpack.c.l.b16 %v63
  %v198 = vunpack.c.l.b16 %v64
  %v199 = vunpack.c.l.b16 %v65
  %v200 = vunpack.c.l.b16 %v66
  %v201 = vunpack.c.l.b16 %v67
  %v202 = vunpack.c.l.b16 %v68
  %v203 = vunpack.c.l.b16 %v69
  %v204 = vunpack.c.l.b16 %v70
  %v205 = vunpack.c.l.b16 %v71
  %v206 = vunpack.c.l.b16 %v72
  %v207 = vunpack.c.l.b16 %v73
  %v208 = vunpack.c.l.b16 %v74
  %v209 = vunpack.c.l.b16 %v75
  %v210 = vunpack.c.l.b16 %v76
  %v211 = vunpack.c.l.b16 %v77
  %v212 = vunpack.c.l.b16 %v78
  %v213 = vunpack.c.l.b16 %v79
  %v214 = vunpack.c.l.b16 %v80
  %v215 = vunpack.c.l.b16 %v81
  %v216 = vunpack.c.l.b16 %v82
  %v217 = vunpack.c.l.b16 %v83
  %v218 = vunpack.c.l.b16 %v84
  %v219 = vunpack.c.l.b16 %v85
  %v220 = vunpack.c.l.b16 %v86
  %v221 = vunpack.c.l.b16 %v87
  %v222 = vunpack.c.l.b16 %v88
  %v223 = vunpack.c.l.b16 %v89
  %v224 = vunpack.c.l.b16 %v90
  %v225 = vunpack.c.l.b16 %v91
  %v226 = vpack.c.b16 %v163, %v162
  %v227 = vpack.c.b16 %v165, %v164
  %v228 = vpack.c.b16 %v167, %v166
  %v229 = vpack.c.b16 %v169, %v168
  %v230 = vpack.c.b16 %v171, %v170
  %v231 = vpack.c.b16 %v173, %v172
  %v232 = vpack.c.b16 %v175, %v174
  %v233 = vpack.c.b16 %v177, %v176
  %v234 = vpack.c.b16 %v179, %v178
  %v235 = vpack.c.b16 %v181, %v180
  %v236 = vpack.c.b16 %v183, %v182
  %v237 = vpack.c.b16 %v185, %v184
  %v238 = vpack.c.b16 %v187, %v186
  %v239 = vpack.c.b16 %v189, %v188
  %v240 = vpack.c.b16 %v191, %v190
  %v241 = vpack.c.b16 %v193, %v192
  %v242 = vpack.c.b16 %v195, %v194
  %v243 = vpack.c.b16 %v197, %v196
  %v244 = vpack.c.b16 %v199, %v198
  %v245 = vpack.c.b16 %v201, %v200
  %v246 = vpack.c.b16 %v203, %v202
  %v247 = vpack.c.b16 %v205, %v204
  %v248 = vpack.c.b16 %v207, %v206
  %v249 = vpack.c.b16 %v209, %v208
  %v250 = vpack.c.b16 %v211, %v210
  %v251 = vpack.c.b16 %v213, %v212
  %v252 = vpack.c.b16 %v215, %v214
  %v253 = vpack.c.b16 %v217, %v216
  %v254 = vpack.c.b16 %v219, %v218
  %v255 = vpack.c.b16 %v221, %v220
  %v256 = vpack.c.b16 %v223, %v222
  %v257 = vpack.c.b16 %v225, %v224
  %290 = vmatprep.subr.bf16.mxu0 0
  %291 = vmatpush1.bf16.xpose.msra.mxu0 %v233
  %292 = vmatprep.subr.bf16.mxu0 0
  %293 = vmatpush1.bf16.xpose.msra.mxu0 %v232
  %294 = vmatprep.subr.bf16.mxu0 0
  %295 = vmatpush1.bf16.xpose.msra.mxu0 %v231
  %296 = vmatprep.subr.bf16.mxu0 0
  %297 = vmatpush1.bf16.xpose.msra.mxu0 %v230
  %298 = vmatprep.subr.bf16.mxu0 0
  %299 = vmatpush1.bf16.xpose.msra.mxu0 %v229
  %300 = vmatprep.subr.bf16.mxu0 0
  %301 = vmatpush1.bf16.xpose.msra.mxu0 %v228
  %302 = vmatprep.subr.bf16.mxu0 0
  %303 = vmatpush1.bf16.xpose.msra.mxu0 %v227
  %304 = vmatprep.subr.bf16.mxu0 0
  %305 = vmatpush1.bf16.xpose.msra.mxu0 %v226
  %306 = vmatprep.subr.bf16.mxu0 0
  %307 = vmatpush2.bf16.xpose.msra.mxu0 %v241
  %308 = vmatprep.subr.bf16.mxu0 0
  %309 = vmatpush2.bf16.xpose.msra.mxu0 %v240
  %310 = vmatprep.subr.bf16.mxu0 0
  %311 = vmatpush2.bf16.xpose.msra.mxu0 %v239
  %312 = vmatprep.subr.bf16.mxu0 0
  %313 = vmatpush2.bf16.xpose.msra.mxu0 %v238
  %314 = vmatprep.subr.bf16.mxu0 0
  %315 = vmatpush2.bf16.xpose.msra.mxu0 %v237
  %316 = vmatprep.subr.bf16.mxu0 0
  %317 = vmatpush2.bf16.xpose.msra.mxu0 %v236
  %318 = vmatprep.subr.bf16.mxu0 0
  %319 = vmatpush2.bf16.xpose.msra.mxu0 %v235
  %320 = vmatprep.subr.bf16.mxu0 0
  %321 = vmatpush2.bf16.xpose.msra.mxu0 %v234
  %322 = vmatprep.mubr.bf16.mxu0 0
  %323 = vmatmul.mubr.bf16.gmra.mxu0 %v96
  %v324 = vpop.f32.mrf.mxu0
  %v325 = vadd.f32 0.0, %v324
  %v326 = vpop.f32.mrf.mxu0
  %v327 = vadd.f32 0.0, %v326
  %v328 = vpop.f32.mrf.mxu0
  %v329 = vadd.f32 0.0, %v328
  %v330 = vpop.f32.mrf.mxu0
  %v331 = vadd.f32 0.0, %v330
  %332 = vdwg.mxu0
  %333 = vmatprep.subr.bf16.mxu0 0
  %334 = vmatpush1.bf16.xpose.msra.mxu0 %v249
  %335 = vmatprep.subr.bf16.mxu0 0
  %336 = vmatpush1.bf16.xpose.msra.mxu0 %v248
  %337 = vmatprep.subr.bf16.mxu0 0
  %338 = vmatpush1.bf16.xpose.msra.mxu0 %v247
  %339 = vmatprep.subr.bf16.mxu0 0
  %340 = vmatpush1.bf16.xpose.msra.mxu0 %v246
  %341 = vmatprep.subr.bf16.mxu0 0
  %342 = vmatpush1.bf16.xpose.msra.mxu0 %v245
  %343 = vmatprep.subr.bf16.mxu0 0
  %344 = vmatpush1.bf16.xpose.msra.mxu0 %v244
  %345 = vmatprep.subr.bf16.mxu0 0
  %346 = vmatpush1.bf16.xpose.msra.mxu0 %v243
  %347 = vmatprep.subr.bf16.mxu0 0
  %348 = vmatpush1.bf16.xpose.msra.mxu0 %v242
  %349 = vmatprep.subr.bf16.mxu0 0
  %350 = vmatpush2.bf16.xpose.msra.mxu0 %v257
  %351 = vmatprep.subr.bf16.mxu0 0
  %352 = vmatpush2.bf16.xpose.msra.mxu0 %v256
  %353 = vmatprep.subr.bf16.mxu0 0
  %354 = vmatpush2.bf16.xpose.msra.mxu0 %v255
  %355 = vmatprep.subr.bf16.mxu0 0
  %356 = vmatpush2.bf16.xpose.msra.mxu0 %v254
  %357 = vmatprep.subr.bf16.mxu0 0
  %358 = vmatpush2.bf16.xpose.msra.mxu0 %v253
  %359 = vmatprep.subr.bf16.mxu0 0
  %360 = vmatpush2.bf16.xpose.msra.mxu0 %v252
  %361 = vmatprep.subr.bf16.mxu0 0
  %362 = vmatpush2.bf16.xpose.msra.mxu0 %v251
  %363 = vmatprep.subr.bf16.mxu0 0
  %364 = vmatpush2.bf16.xpose.msra.mxu0 %v250
  %365 = vmatprep.mubr.bf16.mxu0 0
  %366 = vmatmul.mubr.bf16.gmra.mxu0 %v96
  %v367 = vpop.f32.mrf.mxu0
  %v368 = vadd.f32 0.0, %v367
  %v369 = vpop.f32.mrf.mxu0
  %v370 = vadd.f32 0.0, %v369
  %v371 = vpop.f32.mrf.mxu0
  %v372 = vadd.f32 0.0, %v371
  %v373 = vpop.f32.mrf.mxu0
  %v374 = vadd.f32 0.0, %v373
  %375 = vdwg.mxu0
  %v376 = vlaneseq
  %v377 = vand.u32 %v376, 127
  %v378 = vadd.s32 %v377, 128
  %v379 = vadd.s32 %v377, 256
  %v380 = vadd.s32 %v377, 384
  %s381 = smul.u32 0, 512
  %v382 = vstv %s381
  %v383 = vadd.s32 %v377, %v382
  %v384 = vadd.s32 %v378, %v382
  %v385 = vadd.s32 %v379, %v382
  %v386 = vadd.s32 %v380, %v382
  %vm387 = vcmp.lt.s32.totalorder %v383, 512
  %vm388 = vcmp.lt.s32.totalorder %v384, 512
  %vm389 = vcmp.lt.s32.totalorder %v385, 512
  %vm390 = vcmp.lt.s32.totalorder %v386, 512
  %v391 = vsel %vm387, %v325, -1e+30
  %v392 = vsel %vm388, %v327, -1e+30
  %v393 = vsel %vm389, %v368, -1e+30
  %v394 = vsel %vm390, %v370, -1e+30
  %v395 = vsel %vm387, %v329, -1e+30
  %v396 = vsel %vm388, %v331, -1e+30
  %v397 = vsel %vm389, %v372, -1e+30
  %v398 = vsel %vm390, %v374, -1e+30
  %v399 = vld [vmem:[%s0] sm:$0xff]
  %v400 = vld [vmem:[%s0 + $0x8] sm:$0xff]
  %v401 = vld [vmem:[#allocation4] sm:$0xff]
  %v402 = vld [vmem:[#allocation4 + $0x8] sm:$0xff]
  %403 = vset.pattern.permute.xlu0 0
  %404 = vperm.xlu0 %403, %v399
  %v405 = vpop.permute.xlu0 %404
  %406 = vset.pattern.permute.xlu0 0
  %407 = vperm.xlu0 %406, %v400
  %v408 = vpop.permute.xlu0 %407
  %vm409 = vcmp.eq.s32.totalorder %v383, %v405
  %vm410 = vcmp.eq.s32.totalorder %v384, %v405
  %vm411 = vcmp.eq.s32.totalorder %v385, %v405
  %vm412 = vcmp.eq.s32.totalorder %v386, %v405
  %vm413 = vcmp.eq.s32.totalorder %v383, %v408
  %vm414 = vcmp.eq.s32.totalorder %v384, %v408
  %vm415 = vcmp.eq.s32.totalorder %v385, %v408
  %vm416 = vcmp.eq.s32.totalorder %v386, %v408
  %v417 = vsel %vm409, %v391, 0.0
  %v418 = vsel %vm410, %v392, 0.0
  %v419 = vsel %vm411, %v393, 0.0
  %v420 = vsel %vm412, %v394, 0.0
  %v421 = vsel %vm413, %v395, 0.0
  %v422 = vsel %vm414, %v396, 0.0
  %v423 = vsel %vm415, %v397, 0.0
  %v424 = vsel %vm416, %v398, 0.0
  %v425 = vadd.f32 %v417, %v418
  %v426 = vadd.f32 %v425, %v419
  %v427 = vadd.f32 %v426, %v420
  %428 = vadd.xlane.f32.xlu0 %v427
  %v429 = vpop.xlane.xlu0 %428
  %v430 = vadd.f32 %v421, %v422
  %v431 = vadd.f32 %v430, %v423
  %v432 = vadd.f32 %v431, %v424
  %433 = vadd.xlane.f32.xlu0 %v432
  %v434 = vpop.xlane.xlu0 %433
  %v435 = vadd.f32 %v401, %v429
  %v436 = vadd.f32 %v402, %v434
  %vm437 = vcmask 7168
  %438 = vst.msk [vmem:[#allocation4] sm:$0xff] %vm437, %v435
  %439 = vst.msk [vmem:[#allocation4 + $0x8] sm:$0xff] %vm437, %v436
  %v440 = vld [vmem:[#allocation2] sm:$0xff]
  %v441 = vld [vmem:[#allocation2 + $0x8] sm:$0xff]
  %v442 = vmax.f32 %v391, %v393
  %v443 = vmax.f32 %v392, %v394
  %v444 = vmax.f32 %v442, %v443
  %445 = vmax.xlane.f32.xlu0 %v444
  %v446 = vpop.xlane.xlu0 %445
  %v447 = vmax.f32 %v395, %v397
  %v448 = vmax.f32 %v396, %v398
  %v449 = vmax.f32 %v447, %v448
  %450 = vmax.xlane.f32.xlu0 %v449
  %v451 = vpop.xlane.xlu0 %450
  %v452 = vmax.f32 %v440, %v446
  %v453 = vmax.f32 %v441, %v451
  %v454 = vsub.f32 %v440, %v452
  %v455 = vsub.f32 %v441, %v453
  %v456 = vmul.f32 %v454, 1.442695
  %v457 = vpow.pop %v456
  %v458 = vmul.f32 %v455, 1.442695
  %v459 = vpow.pop %v458
  %v460 = vld [vmem:[#allocation3] sm:$0xff]
  %v461 = vld [vmem:[#allocation3 + $0x8] sm:$0xff]
  %v462 = vmul.f32 %v457, %v460
  %v463 = vmul.f32 %v459, %v461
  %465 = vset.pattern.permute.xlu0 0
  %466 = vperm.xlu0 %465, %v452
  %v467 = vpop.permute.xlu0 %466
  %470 = vset.pattern.permute.xlu0 0
  %471 = vperm.xlu0 %470, %v453
  %v472 = vpop.permute.xlu0 %471
  %v474 = vsub.f32 %v391, %v467
  %v475 = vsub.f32 %v392, %v467
  %v476 = vsub.f32 %v393, %v467
  %v477 = vsub.f32 %v394, %v467
  %v478 = vsub.f32 %v395, %v472
  %v479 = vsub.f32 %v396, %v472
  %v480 = vsub.f32 %v397, %v472
  %v481 = vsub.f32 %v398, %v472
  %v482 = vmul.f32 %v474, 1.442695
  %v483 = vpow.pop %v482
  %v484 = vmul.f32 %v475, 1.442695
  %v485 = vpow.pop %v484
  %v486 = vmul.f32 %v476, 1.442695
  %v487 = vpow.pop %v486
  %v488 = vmul.f32 %v477, 1.442695
  %v489 = vpow.pop %v488
  %v490 = vmul.f32 %v478, 1.442695
  %v491 = vpow.pop %v490
  %v492 = vmul.f32 %v479, 1.442695
  %v493 = vpow.pop %v492
  %v494 = vmul.f32 %v480, 1.442695
  %v495 = vpow.pop %v494
  %v496 = vmul.f32 %v481, 1.442695
  %v497 = vpow.pop %v496
  %v498 = vadd.f32 %v483, %v485
  %v499 = vadd.f32 %v498, %v487
  %v500 = vadd.f32 %v499, %v489
  %501 = vadd.xlane.f32.xlu0 %v500
  %v502 = vpop.xlane.xlu0 %501
  %v503 = vadd.f32 %v491, %v493
  %v504 = vadd.f32 %v503, %v495
  %v505 = vadd.f32 %v504, %v497
  %506 = vadd.xlane.f32.xlu0 %v505
  %v507 = vpop.xlane.xlu0 %506
  %v508 = vadd.f32 %v462, %v502
  %v509 = vadd.f32 %v463, %v507
  %510 = vst.msk [vmem:[#allocation3] sm:$0xff] %vm437, %v508
  %511 = vst.msk [vmem:[#allocation3 + $0x8] sm:$0xff] %vm437, %v509
  %512 = vst.msk [vmem:[#allocation2] sm:$0xff] %vm437, %v452
  %513 = vst.msk [vmem:[#allocation2 + $0x8] sm:$0xff] %vm437, %v453
  // Predicated region
  $region18: #{blur_forward.11} parent=0 // pred_check
    %p514 = pneg %p15
  $region19: #{blur_forward.11} parent=0 // pred_check_branch
    %516 = sbr.rel (%p514) target = $region21
  $region20: #{blur_forward.11} parent=0 // pred_region
    %v517 = vld [vmem:[#allocation2] sm:$0xff]
    %v518 = vld [vmem:[#allocation2 + $0x8] sm:$0xff]
    %v519 = vld [vmem:[#allocation3] sm:$0xff]
    %v520 = vld [vmem:[#allocation3 + $0x8] sm:$0xff]
    %v521 = vlog2.pop %v519
    %v522 = vmul.f32 %v521, 0.6931472
    %v523 = vlog2.pop %v520
    %v524 = vmul.f32 %v523, 0.6931472
    %v525 = vadd.f32 %v517, %v522
    %v526 = vadd.f32 %v518, %v524
    %v527 = vld [vmem:[#allocation4] sm:$0xff]
    %v528 = vld [vmem:[#allocation4 + $0x8] sm:$0xff]
    %v529 = vsub.f32 %v525, %v527
    %v530 = vsub.f32 %v526, %v528
    %531 = vst.msk [vmem:[%s3] sm:$0xff] %vm437, %v529
    %532 = vst.msk [vmem:[%s3 + $0x8] sm:$0xff] %vm437, %v530
  $region21: #{blur_forward.11} parent=0 // pred_fallthru
    _
  // Predicated region
  $region22: #{blur_forward.11} parent=0 // pred_check
    _
  $region23: #{blur_forward.11} parent=0 // pred_check_branch
    %534 = sbr.rel (0) target = $region25
  $region24: #{blur_forward.11} parent=0 // pred_region
    _
  $region25: #{blur_forward.11} parent=0 // pred_fallthru
    _
  // Predicated region
  $region26: #{blur_forward.11} parent=0 // pred_check
    _
  $region27: #{blur_forward.11} parent=0 // pred_check_branch
    %536 = sbr.rel (0) target = $region29
  $region28: #{blur_forward.11} parent=0 // pred_region
    _
  $region29: #{blur_forward.11} parent=0 // pred_fallthru
    _

</llo_original>
